<compile_context>
chip_gen: v6e
topology: v6e:2x2x1
jax: 0.10.0
libtpu: 0.0.40
codegen_flags: <defaults>
</compile_context>

<pallas_src>
import functools

import jax
import jax.numpy as jnp
import numpy as np
from jax import lax
from jax.experimental import pallas as pl
from jax.experimental.pallas import tpu as pltpu

SPIKE_THRESH = 0.5


def _round_up(x, m):
    return ((x + m - 1) // m) * m


def _vmem_capacity_bytes():
    """Physical per-core VMEM; conservative (v7x: 64 MiB) fallback if query fails."""
    try:
        return int(pltpu.get_tpu_info().vmem_capacity_bytes)
    except Exception:
        return 64 * 2 ** 20


def _pad_gate_cols(w, n_gates, h, hp):
    """Pad (rows, n_gates*h) -> (rows, n_gates*hp); gate k lands at [k*hp, k*hp+h)."""
    rows = w.shape[0]
    out = jnp.zeros((rows, n_gates * hp), w.dtype)
    for k in range(n_gates):
        out = out.at[:, k * hp:k * hp + h].set(w[:, k * h:(k + 1) * h])
    return out


def _liflstm_kernel(x_ref, w_ref, u_ref, b_ref, out_ref, h_sc, c_sc, pre_sc, *,
                    hidden, decay, seq_len, only_last, unroll):
    TB, BB, Inp = x_ref.shape
    tb = pl.program_id(1)

    # layer.reset(): zero spike/cell state at sequence start (time is the inner
    # grid axis, so it restarts at 0 for every batch block).
    @pl.when(tb == 0)
    def _():
        h_sc[...] = jnp.zeros_like(h_sc)
        c_sc[...] = jnp.zeros_like(c_sc)

    # ---- hoisted input projection (off the serial h-dependence chain) ----
    # One big-M matmul (M = TB*BB) per grid step; bias folds in here. The
    # collapse reshape merges leading dims only (layout-preserving: BB is a
    # multiple of the sublane tile); the unstack into pre_sc uses static slices.
    x2d = x_ref[...].reshape(TB * BB, Inp)
    pre_x = jnp.dot(x2d, w_ref[...], preferred_element_type=jnp.float32) + b_ref[...]
    for s in range(TB):
        pre_sc[s] = pre_x[s * BB:(s + 1) * BB, :]

    u = u_ref[...]                                   # (Hp, 4*Hp) matmul dtype

    def step(s, carry):
        h, c = carry                                 # (BB,Hp) bf16 / f32
        # Serial critical path: h@U + precomputed input projection.
        pre = pre_sc[s] + jnp.dot(h, u, preferred_element_type=jnp.float32)
        i_g = pre[:, 0 * hidden:1 * hidden] > SPIKE_THRESH    # input gate
        f_g = pre[:, 1 * hidden:2 * hidden] > SPIKE_THRESH    # forget gate
        g_g = pre[:, 2 * hidden:3 * hidden] > SPIKE_THRESH    # candidate
        o_g = pre[:, 3 * hidden:4 * hidden] > SPIKE_THRESH    # output gate
        # c = decay*c*f + i*g ; gates are exactly 0/1 -> selects, not multiplies.
        c_new = jnp.where(f_g, decay * c, 0.0) + (i_g & g_g).astype(jnp.float32)
        # h = o * spike(c); spikes are 0/1 so the bf16 output/carry is lossless.
        h_new = (o_g & (c_new > SPIKE_THRESH)).astype(out_ref.dtype)
        if only_last:
            # Resident output block: store exactly once, at the last real step.
            @pl.when(tb * TB + s == seq_len - 1)
            def _():
                out_ref[0] = h_new
        else:
            out_ref[s] = h_new
        return h_new.astype(h_sc.dtype), c_new

    h_fin, c_fin = lax.fori_loop(0, TB, step, (h_sc[...], c_sc[...]),
                                 unroll=unroll)
    h_sc[...] = h_fin
    c_sc[...] = c_fin


def liflstm_forward(data, w_all, u_all, b_all, *, decay=0.3, only_last=False,
                    time_block=8, batch_block=None, matmul_dtype=jnp.bfloat16,
                    time_major=False, unroll=True):
    """LIF-LSTM forward.

    data: [B, inputSize, T] (or [T, B, inputSize] if time_major) float32.
    Weights: W (In, 4H), U (H, 4H), b (4H,).
    Returns [B, H, T] float32 (or [B, H] if only_last)."""
    if time_major:
        T, B, In = data.shape
    else:
        B, In, T = data.shape
    H = u_all.shape[0]
    assert w_all.shape == (In, 4 * H) and u_all.shape == (H, 4 * H)
    assert b_all.shape == (4 * H,)

    # ---- padding for lane/sublane density ----
    Hp = _round_up(H, 128)                     # lane-dense output & gate slabs
    # Lane-dense x when In is non-trivial; tiny In keeps 8-padding (avoids a
    # 16-32x inflation of x HBM traffic -- the hoisted projection already
    # amortizes the small-K matmul over TB*BB rows).
    Inp = _round_up(In, 128) if In >= 64 else _round_up(In, 8)
    Bp16 = _round_up(B, 16)                    # bf16-safe sublane granularity
    mm_bytes = jnp.dtype(matmul_dtype).itemsize
    out_el_bytes = mm_bytes                    # spike output dtype == matmul dtype

    # ---- tile selection, budgeted against this chip's VMEM ----
    vmem_cap = _vmem_capacity_bytes()
    budget = int(0.70 * vmem_cap)              # leave pipeline/compiler headroom

    def est_vmem(tb, bb):
        out_rows = 1 if only_last else tb
        return int(2 * tb * bb * Inp * mm_bytes          # x (double-buffered)
                   + (Inp + Hp) * 4 * Hp * mm_bytes      # W, U (single-buffered)
                   + 4 * Hp * 4                          # bias
                   + 2 * tb * bb * 4 * Hp * 4            # pre_x scratch + live copy
                   + 2 * out_rows * bb * Hp * out_el_bytes   # out (double-buffered)
                   + bb * Hp * (mm_bytes + 4)            # h, c state
                   + 2 * bb * 4 * Hp * 4)                # per-step temporaries

    if batch_block is not None:
        BB = max(16, _round_up(int(batch_block), 16))
    elif Bp16 <= 16:
        BB = 16
    elif Bp16 <= 128:
        # >= 2 batch blocks so v7x's second TensorCore gets work on the
        # "parallel" axis.
        BB = _round_up((Bp16 + 1) // 2, 16)
    elif Bp16 >= 256:
        # Fill the 256-row MXU on v6e/v7x (v5e callers may pass batch_block=128).
        BB = 256
    else:
        BB = 128
    while BB > 16 and est_vmem(1, BB) > budget:
        BB = max(16, _round_up(BB // 2, 16))

    TB = max(1, min(int(time_block), T))       # timesteps per grid step
    while TB > 1 and est_vmem(TB, BB) > budget:
        TB = max(1, (TB + 1) // 2)

    Bp = _round_up(Bp16, BB)
    Tp = _round_up(T, TB)
    n_bb, n_tb = Bp // BB, Tp // TB

    # ---- operand preparation ----
    x_t = data if time_major else jnp.transpose(data, (2, 0, 1))    # [T, B, In]
    x_t = jnp.pad(x_t.astype(matmul_dtype),
                  ((0, Tp - T), (0, Bp - B), (0, Inp - In)))
    w_p = _pad_gate_cols(w_all.astype(matmul_dtype), 4, H, Hp)
    w_p = jnp.pad(w_p, ((0, Inp - In), (0, 0)))                     # (Inp, 4Hp)
    u_p = _pad_gate_cols(u_all.astype(matmul_dtype), 4, H, Hp)
    u_p = jnp.pad(u_p, ((0, Hp - H), (0, 0)))                       # (Hp, 4Hp)
    b_p = _pad_gate_cols(b_all.reshape(1, 4 * H).astype(jnp.float32), 4, H, Hp)

    if only_last:
        out_shape = jax.ShapeDtypeStruct((1, Bp, Hp), matmul_dtype)
        out_spec = pl.BlockSpec((1, BB, Hp), lambda bblk, t: (0, bblk, 0))
    else:
        out_shape = jax.ShapeDtypeStruct((Tp, Bp, Hp), matmul_dtype)
        out_spec = pl.BlockSpec((TB, BB, Hp), lambda bblk, t: (t, bblk, 0))

    kernel = functools.partial(
        _liflstm_kernel, hidden=Hp, decay=float(decay), seq_len=T,
        only_last=only_last, unroll=unroll)

    est = est_vmem(TB, BB)
    vmem_limit = min(int(0.88 * vmem_cap), max(32 * 2 ** 20, int(1.25 * est)))

    flops = 2 * T * B * 4 * H * (In + H)
    out_bytes = (Bp * Hp if only_last else Tp * Bp * Hp) * out_el_bytes
    bytes_accessed = int(x_t.size * mm_bytes + (w_p.size + u_p.size) * mm_bytes
                         + b_p.size * 4 + out_bytes)

    out = pl.pallas_call(
        kernel,
        out_shape=out_shape,
        grid_spec=pltpu.PrefetchScalarGridSpec(
            num_scalar_prefetch=0,
            grid=(n_bb, n_tb),
            in_specs=[
                pl.BlockSpec((TB, BB, Inp), lambda bblk, t: (t, bblk, 0)),
                pl.BlockSpec((Inp, 4 * Hp), lambda bblk, t: (0, 0),
                             pipeline_mode=pl.Buffered(1)),
                pl.BlockSpec((Hp, 4 * Hp), lambda bblk, t: (0, 0),
                             pipeline_mode=pl.Buffered(1)),
                pl.BlockSpec((1, 4 * Hp), lambda bblk, t: (0, 0),
                             pipeline_mode=pl.Buffered(1)),
            ],
            out_specs=out_spec,
            scratch_shapes=[
                pltpu.VMEM((BB, Hp), matmul_dtype),        # h (spike state)
                pltpu.VMEM((BB, Hp), jnp.float32),         # c (membrane state)
                pltpu.VMEM((TB, BB, 4 * Hp), jnp.float32),  # hoisted pre_x
            ],
        ),
        compiler_params=pltpu.CompilerParams(
            dimension_semantics=("parallel", "arbitrary"),   # batch x time
            vmem_limit_bytes=vmem_limit),
        cost_estimate=pl.CostEstimate(flops=flops, transcendentals=0,
                                      bytes_accessed=bytes_accessed),
    )(x_t, w_p, u_p, b_p)

    if only_last:
        return out[0, :B, :H].astype(jnp.float32)                     # [B, H]
    # Transpose runs on bf16 (half the HBM traffic of an f32 transpose), then
    # cast to f32 to match the PyTorch module's output dtype.
    return jnp.transpose(out[:T, :B, :H], (1, 2, 0)).astype(jnp.float32)


def liflstm_reference(data, w_all, u_all, b_all, *, decay=0.3, only_last=False,
                      matmul_dtype=jnp.float32):
    """Pure-JAX reference (lax.scan over time, same math / operand precision)."""
    B, In, T = data.shape
    H = u_all.shape[0]
    data_t = jnp.transpose(data, (2, 0, 1)).astype(matmul_dtype)
    w = w_all.astype(matmul_dtype)
    u = u_all.astype(matmul_dtype)
    b = b_all.astype(jnp.float32)

    def step(carry, x):
        h, c = carry
        pre = (jnp.dot(x, w, preferred_element_type=jnp.float32) + b[None, :]
               + jnp.dot(h.astype(matmul_dtype), u,
                         preferred_element_type=jnp.float32))
        i = (pre[:, 0 * H:1 * H] > SPIKE_THRESH).astype(jnp.float32)
        f = (pre[:, 1 * H:2 * H] > SPIKE_THRESH).astype(jnp.float32)
        g = (pre[:, 2 * H:3 * H] > SPIKE_THRESH).astype(jnp.float32)
        o = (pre[:, 3 * H:4 * H] > SPIKE_THRESH).astype(jnp.float32)
        c = decay * c * f + i * g
        h = o * (c > SPIKE_THRESH).astype(jnp.float32)
        return (h, c), h

    init = (jnp.zeros((B, H), jnp.float32), jnp.zeros((B, H), jnp.float32))
    (h_last, _), outs = jax.lax.scan(step, init, data_t)
    if only_last:
        return h_last
    return jnp.transpose(outs, (1, 2, 0))


if __name__ == "__main__":
    B, In, H, T = 2, 4, 32, 8
    key = jax.random.PRNGKey(0)
    k_x, k_w, k_u, k_b = jax.random.split(key, 4)

    bound_w = 1.0 / np.sqrt(In)
    bound_u = 1.0 / np.sqrt(H)
    data = jax.random.normal(k_x, (B, In, T), dtype=jnp.float32)
    w_all = jax.random.uniform(k_w, (In, 4 * H), jnp.float32, -bound_w, bound_w)
    u_all = jax.random.uniform(k_u, (H, 4 * H), jnp.float32, -bound_u, bound_u)
    b_all = jax.random.uniform(k_b, (4 * H,), jnp.float32, -bound_w, bound_w)

    # Full-sequence output. The reference uses the same (bf16) operand
    # precision so spike thresholding matches exactly.
    # TODO(synk): validate against the real (f32) PyTorch cell before claiming
    # full parity; bf16 operands can flip spikes for values near the threshold.
    out = jax.block_until_ready(
        liflstm_forward(data, w_all, u_all, b_all, decay=0.3))
    assert out.shape == (B, H, T), out.shape
    ref = liflstm_reference(data, w_all, u_all, b_all, decay=0.3,
                            matmul_dtype=jnp.bfloat16)
    np.testing.assert_allclose(np.asarray(out), np.asarray(ref),
                               atol=1e-5, rtol=1e-5)

    # onlyLast path with a time block that does not divide T (exercises the
    # resident output block and the single equality-guarded store).
    out_last = jax.block_until_ready(
        liflstm_forward(data, w_all, u_all, b_all, decay=0.3, only_last=True,
                        time_block=3))
    assert out_last.shape == (B, H), out_last.shape
    ref_last = liflstm_reference(data, w_all, u_all, b_all, decay=0.3,
                                 only_last=True, matmul_dtype=jnp.bfloat16)
    np.testing.assert_allclose(np.asarray(out_last), np.asarray(ref_last),
                               atol=1e-5, rtol=1e-5)

    # Time-major input path skips the wrapper-side input transpose.
    out_tm = jax.block_until_ready(
        liflstm_forward(jnp.transpose(data, (2, 0, 1)), w_all, u_all, b_all,
                        decay=0.3, time_major=True))
    np.testing.assert_allclose(np.asarray(out_tm), np.asarray(out),
                               atol=1e-5, rtol=1e-5)

    print("KERNEL_OK")
</pallas_src>

<mosaic_0001>
module attributes {stable_mosaic.version = 11 : i64} {
  func.func @_liflstm_kernel(%arg0: i32, %arg1: i32, %arg2: memref<8x16x8xbf16, #tpu.memory_space<vmem>>, %arg3: memref<8x512xbf16, #tpu.memory_space<vmem>>, %arg4: memref<128x512xbf16, #tpu.memory_space<vmem>>, %arg5: memref<1x512xf32, #tpu.memory_space<vmem>>, %arg6: memref<8x16x128xbf16, #tpu.memory_space<vmem>>, %arg7: memref<16x128xbf16, #tpu.memory_space<vmem>>, %arg8: memref<16x128xf32, #tpu.memory_space<vmem>>, %arg9: memref<8x16x512xf32, #tpu.memory_space<vmem>>) attributes {dimension_semantics = [#tpu.dimension_semantics<parallel>, #tpu.dimension_semantics<arbitrary>], iteration_bounds = array<i64: 1, 1>, scalar_prefetch = 0 : i64, scratch_operands = 3 : i64, tpu.core_type = #tpu.core_type<tc>, window_params = [{transform_indices = @transform_0, window_bounds = array<i64: 8, 16, 8>}, {pipeline_mode = #tpu.pipeline_mode<synchronous>, transform_indices = @transform_1, window_bounds = array<i64: 8, 512>}, {pipeline_mode = #tpu.pipeline_mode<synchronous>, transform_indices = @transform_2, window_bounds = array<i64: 128, 512>}, {pipeline_mode = #tpu.pipeline_mode<synchronous>, transform_indices = @transform_3, window_bounds = array<i64: 1, 512>}, {transform_indices = @transform_4, window_bounds = array<i64: 8, 16, 128>}]} {
    %c0_i32 = arith.constant 0 : i32
    %0 = arith.cmpi eq, %arg1, %c0_i32 : i32
    %1 = arith.extui %0 : i1 to i32
    %c0_i32_0 = arith.constant 0 : i32
    %2 = arith.cmpi ne, %1, %c0_i32_0 : i32
    scf.if %2 {
      %cst_131 = arith.constant 0.000000e+00 : bf16
      %327 = vector.broadcast %cst_131 : bf16 to vector<16x128xbf16>
      %c0_132 = arith.constant 0 : index
      %c0_133 = arith.constant 0 : index
      %328 = vector.load %arg7[%c0_132, %c0_133] : memref<16x128xbf16, #tpu.memory_space<vmem>>, vector<16x128xbf16>
      tpu.vector_store %arg7[%c0_132, %c0_133], %327 {strides = array<i32>} : memref<16x128xbf16, #tpu.memory_space<vmem>>, vector<16x128xbf16>,
      %cst_134 = arith.constant 0.000000e+00 : f32
      %329 = vector.broadcast %cst_134 : f32 to vector<16x128xf32>
      %c0_135 = arith.constant 0 : index
      %c0_136 = arith.constant 0 : index
      %330 = vector.load %arg8[%c0_135, %c0_136] : memref<16x128xf32, #tpu.memory_space<vmem>>, vector<16x128xf32>
      tpu.vector_store %arg8[%c0_135, %c0_136], %329 {strides = array<i32>} : memref<16x128xf32, #tpu.memory_space<vmem>>, vector<16x128xf32>,
    } else {
    }
    %c0 = arith.constant 0 : index
    %c0_1 = arith.constant 0 : index
    %c0_2 = arith.constant 0 : index
    %3 = vector.load %arg2[%c0, %c0_1, %c0_2] : memref<8x16x8xbf16, #tpu.memory_space<vmem>>, vector<8x16x8xbf16>
    %4 = vector.shape_cast %3 : vector<8x16x8xbf16> to vector<128x8xbf16>
    %c0_3 = arith.constant 0 : index
    %c0_4 = arith.constant 0 : index
    %5 = vector.load %arg3[%c0_3, %c0_4] : memref<8x512xbf16, #tpu.memory_space<vmem>>, vector<8x512xbf16>
    %cst = arith.constant dense<0.000000e+00> : vector<128x512xf32>
    %6 = tpu.matmul %4, %5, %cst {dimension_numbers = #tpu.dot_dimension_numbers<[1], [0], [0], [1], [0, 0, 1, 1], [], []>} : vector<128x8xbf16>, vector<8x512xbf16>, vector<128x512xf32> -> vector<128x512xf32>
    %c0_5 = arith.constant 0 : index
    %c0_6 = arith.constant 0 : index
    %7 = vector.load %arg5[%c0_5, %c0_6] : memref<1x512xf32, #tpu.memory_space<vmem>>, vector<1x512xf32>
    %8 = vector.broadcast %7 : vector<1x512xf32> to vector<128x512xf32>
    %9 = arith.addf %6, %8 : vector<128x512xf32>
    %10 = vector.extract_strided_slice %9 {offsets = [0, 0], sizes = [16, 512], strides = [1, 1]} : vector<128x512xf32> to vector<16x512xf32>
    %c0_7 = arith.constant 0 : index
    %c0_8 = arith.constant 0 : index
    %c0_9 = arith.constant 0 : index
    %11 = vector.load %arg9[%c0_7, %c0_8, %c0_9] : memref<8x16x512xf32, #tpu.memory_space<vmem>>, vector<1x16x512xf32>
    %12 = vector.shape_cast %11 : vector<1x16x512xf32> to vector<16x512xf32>
    %13 = vector.shape_cast %10 : vector<16x512xf32> to vector<1x16x512xf32>
    tpu.vector_store %arg9[%c0_7, %c0_8, %c0_9], %13 {strides = array<i32>} : memref<8x16x512xf32, #tpu.memory_space<vmem>>, vector<1x16x512xf32>,
    %14 = vector.extract_strided_slice %9 {offsets = [16, 0], sizes = [16, 512], strides = [1, 1]} : vector<128x512xf32> to vector<16x512xf32>
    %c1 = arith.constant 1 : index
    %c0_10 = arith.constant 0 : index
    %c0_11 = arith.constant 0 : index
    %15 = vector.load %arg9[%c1, %c0_10, %c0_11] : memref<8x16x512xf32, #tpu.memory_space<vmem>>, vector<1x16x512xf32>
    %16 = vector.shape_cast %15 : vector<1x16x512xf32> to vector<16x512xf32>
    %17 = vector.shape_cast %14 : vector<16x512xf32> to vector<1x16x512xf32>
    tpu.vector_store %arg9[%c1, %c0_10, %c0_11], %17 {strides = array<i32>} : memref<8x16x512xf32, #tpu.memory_space<vmem>>, vector<1x16x512xf32>,
    %18 = vector.extract_strided_slice %9 {offsets = [32, 0], sizes = [16, 512], strides = [1, 1]} : vector<128x512xf32> to vector<16x512xf32>
    %c2 = arith.constant 2 : index
    %c0_12 = arith.constant 0 : index
    %c0_13 = arith.constant 0 : index
    %19 = vector.load %arg9[%c2, %c0_12, %c0_13] : memref<8x16x512xf32, #tpu.memory_space<vmem>>, vector<1x16x512xf32>
    %20 = vector.shape_cast %19 : vector<1x16x512xf32> to vector<16x512xf32>
    %21 = vector.shape_cast %18 : vector<16x512xf32> to vector<1x16x512xf32>
    tpu.vector_store %arg9[%c2, %c0_12, %c0_13], %21 {strides = array<i32>} : memref<8x16x512xf32, #tpu.memory_space<vmem>>, vector<1x16x512xf32>,
    %22 = vector.extract_strided_slice %9 {offsets = [48, 0], sizes = [16, 512], strides = [1, 1]} : vector<128x512xf32> to vector<16x512xf32>
    %c3 = arith.constant 3 : index
    %c0_14 = arith.constant 0 : index
    %c0_15 = arith.constant 0 : index
    %23 = vector.load %arg9[%c3, %c0_14, %c0_15] : memref<8x16x512xf32, #tpu.memory_space<vmem>>, vector<1x16x512xf32>
    %24 = vector.shape_cast %23 : vector<1x16x512xf32> to vector<16x512xf32>
    %25 = vector.shape_cast %22 : vector<16x512xf32> to vector<1x16x512xf32>
    tpu.vector_store %arg9[%c3, %c0_14, %c0_15], %25 {strides = array<i32>} : memref<8x16x512xf32, #tpu.memory_space<vmem>>, vector<1x16x512xf32>,
    %26 = vector.extract_strided_slice %9 {offsets = [64, 0], sizes = [16, 512], strides = [1, 1]} : vector<128x512xf32> to vector<16x512xf32>
    %c4 = arith.constant 4 : index
    %c0_16 = arith.constant 0 : index
    %c0_17 = arith.constant 0 : index
    %27 = vector.load %arg9[%c4, %c0_16, %c0_17] : memref<8x16x512xf32, #tpu.memory_space<vmem>>, vector<1x16x512xf32>
    %28 = vector.shape_cast %27 : vector<1x16x512xf32> to vector<16x512xf32>
    %29 = vector.shape_cast %26 : vector<16x512xf32> to vector<1x16x512xf32>
    tpu.vector_store %arg9[%c4, %c0_16, %c0_17], %29 {strides = array<i32>} : memref<8x16x512xf32, #tpu.memory_space<vmem>>, vector<1x16x512xf32>,
    %30 = vector.extract_strided_slice %9 {offsets = [80, 0], sizes = [16, 512], strides = [1, 1]} : vector<128x512xf32> to vector<16x512xf32>
    %c5 = arith.constant 5 : index
    %c0_18 = arith.constant 0 : index
    %c0_19 = arith.constant 0 : index
    %31 = vector.load %arg9[%c5, %c0_18, %c0_19] : memref<8x16x512xf32, #tpu.memory_space<vmem>>, vector<1x16x512xf32>
    %32 = vector.shape_cast %31 : vector<1x16x512xf32> to vector<16x512xf32>
    %33 = vector.shape_cast %30 : vector<16x512xf32> to vector<1x16x512xf32>
    tpu.vector_store %arg9[%c5, %c0_18, %c0_19], %33 {strides = array<i32>} : memref<8x16x512xf32, #tpu.memory_space<vmem>>, vector<1x16x512xf32>,
    %34 = vector.extract_strided_slice %9 {offsets = [96, 0], sizes = [16, 512], strides = [1, 1]} : vector<128x512xf32> to vector<16x512xf32>
    %c6 = arith.constant 6 : index
    %c0_20 = arith.constant 0 : index
    %c0_21 = arith.constant 0 : index
    %35 = vector.load %arg9[%c6, %c0_20, %c0_21] : memref<8x16x512xf32, #tpu.memory_space<vmem>>, vector<1x16x512xf32>
    %36 = vector.shape_cast %35 : vector<1x16x512xf32> to vector<16x512xf32>
    %37 = vector.shape_cast %34 : vector<16x512xf32> to vector<1x16x512xf32>
    tpu.vector_store %arg9[%c6, %c0_20, %c0_21], %37 {strides = array<i32>} : memref<8x16x512xf32, #tpu.memory_space<vmem>>, vector<1x16x512xf32>,
    %38 = vector.extract_strided_slice %9 {offsets = [112, 0], sizes = [16, 512], strides = [1, 1]} : vector<128x512xf32> to vector<16x512xf32>
    %c7 = arith.constant 7 : index
    %c0_22 = arith.constant 0 : index
    %c0_23 = arith.constant 0 : index
    %39 = vector.load %arg9[%c7, %c0_22, %c0_23] : memref<8x16x512xf32, #tpu.memory_space<vmem>>, vector<1x16x512xf32>
    %40 = vector.shape_cast %39 : vector<1x16x512xf32> to vector<16x512xf32>
    %41 = vector.shape_cast %38 : vector<16x512xf32> to vector<1x16x512xf32>
    tpu.vector_store %arg9[%c7, %c0_22, %c0_23], %41 {strides = array<i32>} : memref<8x16x512xf32, #tpu.memory_space<vmem>>, vector<1x16x512xf32>,
    %c0_24 = arith.constant 0 : index
    %c0_25 = arith.constant 0 : index
    %42 = vector.load %arg4[%c0_24, %c0_25] : memref<128x512xbf16, #tpu.memory_space<vmem>>, vector<128x512xbf16>
    %c0_26 = arith.constant 0 : index
    %c0_27 = arith.constant 0 : index
    %43 = vector.load %arg7[%c0_26, %c0_27] : memref<16x128xbf16, #tpu.memory_space<vmem>>, vector<16x128xbf16>
    %c0_28 = arith.constant 0 : index
    %c0_29 = arith.constant 0 : index
    %44 = vector.load %arg8[%c0_28, %c0_29] : memref<16x128xf32, #tpu.memory_space<vmem>>, vector<16x128xf32>
    %c0_i32_30 = arith.constant 0 : i32
    %45 = arith.index_cast %c0_i32_30 : i32 to index
    %c0_31 = arith.constant 0 : index
    %c0_32 = arith.constant 0 : index
    %46 = vector.load %arg9[%45, %c0_31, %c0_32] : memref<8x16x512xf32, #tpu.memory_space<vmem>>, vector<1x16x512xf32>
    %47 = vector.shape_cast %46 : vector<1x16x512xf32> to vector<16x512xf32>
    %cst_33 = arith.constant dense<0.000000e+00> : vector<16x512xf32>
    %48 = tpu.matmul %43, %42, %cst_33 {dimension_numbers = #tpu.dot_dimension_numbers<[1], [0], [0], [1], [0, 0, 1, 1], [], []>} : vector<16x128xbf16>, vector<128x512xbf16>, vector<16x512xf32> -> vector<16x512xf32>
    %49 = arith.addf %47, %48 : vector<16x512xf32>
    %50 = vector.extract_strided_slice %49 {offsets = [0, 0], sizes = [16, 128], strides = [1, 1]} : vector<16x512xf32> to vector<16x128xf32>
    %cst_34 = arith.constant 5.000000e-01 : f32
    %51 = vector.broadcast %cst_34 : f32 to vector<16x128xf32>
    %52 = arith.cmpf ogt, %50, %51 : vector<16x128xf32>
    %53 = vector.extract_strided_slice %49 {offsets = [0, 128], sizes = [16, 128], strides = [1, 1]} : vector<16x512xf32> to vector<16x128xf32>
    %cst_35 = arith.constant 5.000000e-01 : f32
    %54 = vector.broadcast %cst_35 : f32 to vector<16x128xf32>
    %55 = arith.cmpf ogt, %53, %54 : vector<16x128xf32>
    %56 = vector.extract_strided_slice %49 {offsets = [0, 256], sizes = [16, 128], strides = [1, 1]} : vector<16x512xf32> to vector<16x128xf32>
    %cst_36 = arith.constant 5.000000e-01 : f32
    %57 = vector.broadcast %cst_36 : f32 to vector<16x128xf32>
    %58 = arith.cmpf ogt, %56, %57 : vector<16x128xf32>
    %59 = vector.extract_strided_slice %49 {offsets = [0, 384], sizes = [16, 128], strides = [1, 1]} : vector<16x512xf32> to vector<16x128xf32>
    %cst_37 = arith.constant 5.000000e-01 : f32
    %60 = vector.broadcast %cst_37 : f32 to vector<16x128xf32>
    %61 = arith.cmpf ogt, %59, %60 : vector<16x128xf32>
    %cst_38 = arith.constant 3.000000e-01 : f32
    %62 = vector.broadcast %cst_38 : f32 to vector<16x128xf32>
    %63 = arith.mulf %62, %44 : vector<16x128xf32>
    %cst_39 = arith.constant 0.000000e+00 : f32
    %64 = vector.broadcast %cst_39 : f32 to vector<16x128xf32>
    %65 = arith.select %55, %63, %64 : vector<16x128xi1>, vector<16x128xf32>
    %66 = arith.andi %52, %58 : vector<16x128xi1>
    %67 = arith.extui %66 : vector<16x128xi1> to vector<16x128xi32>
    %68 = arith.sitofp %67 : vector<16x128xi32> to vector<16x128xf32>
    %69 = arith.addf %65, %68 : vector<16x128xf32>
    %cst_40 = arith.constant 5.000000e-01 : f32
    %70 = vector.broadcast %cst_40 : f32 to vector<16x128xf32>
    %71 = arith.cmpf ogt, %69, %70 : vector<16x128xf32>
    %72 = arith.andi %61, %71 : vector<16x128xi1>
    %73 = arith.extui %72 : vector<16x128xi1> to vector<16x128xi32>
    %74 = arith.sitofp %73 : vector<16x128xi32> to vector<16x128xf32>
    %75 = arith.truncf %74 : vector<16x128xf32> to vector<16x128xbf16>
    %76 = arith.index_cast %c0_i32_30 : i32 to index
    %c0_41 = arith.constant 0 : index
    %c0_42 = arith.constant 0 : index
    %77 = vector.load %arg6[%76, %c0_41, %c0_42] : memref<8x16x128xbf16, #tpu.memory_space<vmem>>, vector<1x16x128xbf16>
    %78 = vector.shape_cast %77 : vector<1x16x128xbf16> to vector<16x128xbf16>
    %79 = vector.shape_cast %75 : vector<16x128xbf16> to vector<1x16x128xbf16>
    tpu.vector_store %arg6[%76, %c0_41, %c0_42], %79 {strides = array<i32>} : memref<8x16x128xbf16, #tpu.memory_space<vmem>>, vector<1x16x128xbf16>,
    %c1_i32 = arith.constant 1 : i32
    %80 = arith.index_cast %c1_i32 : i32 to index
    %c0_43 = arith.constant 0 : index
    %c0_44 = arith.constant 0 : index
    %81 = vector.load %arg9[%80, %c0_43, %c0_44] : memref<8x16x512xf32, #tpu.memory_space<vmem>>, vector<1x16x512xf32>
    %82 = vector.shape_cast %81 : vector<1x16x512xf32> to vector<16x512xf32>
    %cst_45 = arith.constant dense<0.000000e+00> : vector<16x512xf32>
    %83 = tpu.matmul %75, %42, %cst_45 {dimension_numbers = #tpu.dot_dimension_numbers<[1], [0], [0], [1], [0, 0, 1, 1], [], []>} : vector<16x128xbf16>, vector<128x512xbf16>, vector<16x512xf32> -> vector<16x512xf32>
    %84 = arith.addf %82, %83 : vector<16x512xf32>
    %85 = vector.extract_strided_slice %84 {offsets = [0, 0], sizes = [16, 128], strides = [1, 1]} : vector<16x512xf32> to vector<16x128xf32>
    %cst_46 = arith.constant 5.000000e-01 : f32
    %86 = vector.broadcast %cst_46 : f32 to vector<16x128xf32>
    %87 = arith.cmpf ogt, %85, %86 : vector<16x128xf32>
    %88 = vector.extract_strided_slice %84 {offsets = [0, 128], sizes = [16, 128], strides = [1, 1]} : vector<16x512xf32> to vector<16x128xf32>
    %cst_47 = arith.constant 5.000000e-01 : f32
    %89 = vector.broadcast %cst_47 : f32 to vector<16x128xf32>
    %90 = arith.cmpf ogt, %88, %89 : vector<16x128xf32>
    %91 = vector.extract_strided_slice %84 {offsets = [0, 256], sizes = [16, 128], strides = [1, 1]} : vector<16x512xf32> to vector<16x128xf32>
    %cst_48 = arith.constant 5.000000e-01 : f32
    %92 = vector.broadcast %cst_48 : f32 to vector<16x128xf32>
    %93 = arith.cmpf ogt, %91, %92 : vector<16x128xf32>
    %94 = vector.extract_strided_slice %84 {offsets = [0, 384], sizes = [16, 128], strides = [1, 1]} : vector<16x512xf32> to vector<16x128xf32>
    %cst_49 = arith.constant 5.000000e-01 : f32
    %95 = vector.broadcast %cst_49 : f32 to vector<16x128xf32>
    %96 = arith.cmpf ogt, %94, %95 : vector<16x128xf32>
    %cst_50 = arith.constant 3.000000e-01 : f32
    %97 = vector.broadcast %cst_50 : f32 to vector<16x128xf32>
    %98 = arith.mulf %97, %69 : vector<16x128xf32>
    %cst_51 = arith.constant 0.000000e+00 : f32
    %99 = vector.broadcast %cst_51 : f32 to vector<16x128xf32>
    %100 = arith.select %90, %98, %99 : vector<16x128xi1>, vector<16x128xf32>
    %101 = arith.andi %87, %93 : vector<16x128xi1>
    %102 = arith.extui %101 : vector<16x128xi1> to vector<16x128xi32>
    %103 = arith.sitofp %102 : vector<16x128xi32> to vector<16x128xf32>
    %104 = arith.addf %100, %103 : vector<16x128xf32>
    %cst_52 = arith.constant 5.000000e-01 : f32
    %105 = vector.broadcast %cst_52 : f32 to vector<16x128xf32>
    %106 = arith.cmpf ogt, %104, %105 : vector<16x128xf32>
    %107 = arith.andi %96, %106 : vector<16x128xi1>
    %108 = arith.extui %107 : vector<16x128xi1> to vector<16x128xi32>
    %109 = arith.sitofp %108 : vector<16x128xi32> to vector<16x128xf32>
    %110 = arith.truncf %109 : vector<16x128xf32> to vector<16x128xbf16>
    %111 = arith.index_cast %c1_i32 : i32 to index
    %c0_53 = arith.constant 0 : index
    %c0_54 = arith.constant 0 : index
    %112 = vector.load %arg6[%111, %c0_53, %c0_54] : memref<8x16x128xbf16, #tpu.memory_space<vmem>>, vector<1x16x128xbf16>
    %113 = vector.shape_cast %112 : vector<1x16x128xbf16> to vector<16x128xbf16>
    %114 = vector.shape_cast %110 : vector<16x128xbf16> to vector<1x16x128xbf16>
    tpu.vector_store %arg6[%111, %c0_53, %c0_54], %114 {strides = array<i32>} : memref<8x16x128xbf16, #tpu.memory_space<vmem>>, vector<1x16x128xbf16>,
    %c2_i32 = arith.constant 2 : i32
    %115 = arith.index_cast %c2_i32 : i32 to index
    %c0_55 = arith.constant 0 : index
    %c0_56 = arith.constant 0 : index
    %116 = vector.load %arg9[%115, %c0_55, %c0_56] : memref<8x16x512xf32, #tpu.memory_space<vmem>>, vector<1x16x512xf32>
    %117 = vector.shape_cast %116 : vector<1x16x512xf32> to vector<16x512xf32>
    %cst_57 = arith.constant dense<0.000000e+00> : vector<16x512xf32>
    %118 = tpu.matmul %110, %42, %cst_57 {dimension_numbers = #tpu.dot_dimension_numbers<[1], [0], [0], [1], [0, 0, 1, 1], [], []>} : vector<16x128xbf16>, vector<128x512xbf16>, vector<16x512xf32> -> vector<16x512xf32>
    %119 = arith.addf %117, %118 : vector<16x512xf32>
    %120 = vector.extract_strided_slice %119 {offsets = [0, 0], sizes = [16, 128], strides = [1, 1]} : vector<16x512xf32> to vector<16x128xf32>
    %cst_58 = arith.constant 5.000000e-01 : f32
    %121 = vector.broadcast %cst_58 : f32 to vector<16x128xf32>
    %122 = arith.cmpf ogt, %120, %121 : vector<16x128xf32>
    %123 = vector.extract_strided_slice %119 {offsets = [0, 128], sizes = [16, 128], strides = [1, 1]} : vector<16x512xf32> to vector<16x128xf32>
    %cst_59 = arith.constant 5.000000e-01 : f32
    %124 = vector.broadcast %cst_59 : f32 to vector<16x128xf32>
    %125 = arith.cmpf ogt, %123, %124 : vector<16x128xf32>
    %126 = vector.extract_strided_slice %119 {offsets = [0, 256], sizes = [16, 128], strides = [1, 1]} : vector<16x512xf32> to vector<16x128xf32>
    %cst_60 = arith.constant 5.000000e-01 : f32
    %127 = vector.broadcast %cst_60 : f32 to vector<16x128xf32>
    %128 = arith.cmpf ogt, %126, %127 : vector<16x128xf32>
    %129 = vector.extract_strided_slice %119 {offsets = [0, 384], sizes = [16, 128], strides = [1, 1]} : vector<16x512xf32> to vector<16x128xf32>
    %cst_61 = arith.constant 5.000000e-01 : f32
    %130 = vector.broadcast %cst_61 : f32 to vector<16x128xf32>
    %131 = arith.cmpf ogt, %129, %130 : vector<16x128xf32>
    %cst_62 = arith.constant 3.000000e-01 : f32
    %132 = vector.broadcast %cst_62 : f32 to vector<16x128xf32>
    %133 = arith.mulf %132, %104 : vector<16x128xf32>
    %cst_63 = arith.constant 0.000000e+00 : f32
    %134 = vector.broadcast %cst_63 : f32 to vector<16x128xf32>
    %135 = arith.select %125, %133, %134 : vector<16x128xi1>, vector<16x128xf32>
    %136 = arith.andi %122, %128 : vector<16x128xi1>
    %137 = arith.extui %136 : vector<16x128xi1> to vector<16x128xi32>
    %138 = arith.sitofp %137 : vector<16x128xi32> to vector<16x128xf32>
    %139 = arith.addf %135, %138 : vector<16x128xf32>
    %cst_64 = arith.constant 5.000000e-01 : f32
    %140 = vector.broadcast %cst_64 : f32 to vector<16x128xf32>
    %141 = arith.cmpf ogt, %139, %140 : vector<16x128xf32>
    %142 = arith.andi %131, %141 : vector<16x128xi1>
    %143 = arith.extui %142 : vector<16x128xi1> to vector<16x128xi32>
    %144 = arith.sitofp %143 : vector<16x128xi32> to vector<16x128xf32>
    %145 = arith.truncf %144 : vector<16x128xf32> to vector<16x128xbf16>
    %146 = arith.index_cast %c2_i32 : i32 to index
    %c0_65 = arith.constant 0 : index
    %c0_66 = arith.constant 0 : index
    %147 = vector.load %arg6[%146, %c0_65, %c0_66] : memref<8x16x128xbf16, #tpu.memory_space<vmem>>, vector<1x16x128xbf16>
    %148 = vector.shape_cast %147 : vector<1x16x128xbf16> to vector<16x128xbf16>
    %149 = vector.shape_cast %145 : vector<16x128xbf16> to vector<1x16x128xbf16>
    tpu.vector_store %arg6[%146, %c0_65, %c0_66], %149 {strides = array<i32>} : memref<8x16x128xbf16, #tpu.memory_space<vmem>>, vector<1x16x128xbf16>,
    %c3_i32 = arith.constant 3 : i32
    %150 = arith.index_cast %c3_i32 : i32 to index
    %c0_67 = arith.constant 0 : index
    %c0_68 = arith.constant 0 : index
    %151 = vector.load %arg9[%150, %c0_67, %c0_68] : memref<8x16x512xf32, #tpu.memory_space<vmem>>, vector<1x16x512xf32>
    %152 = vector.shape_cast %151 : vector<1x16x512xf32> to vector<16x512xf32>
    %cst_69 = arith.constant dense<0.000000e+00> : vector<16x512xf32>
    %153 = tpu.matmul %145, %42, %cst_69 {dimension_numbers = #tpu.dot_dimension_numbers<[1], [0], [0], [1], [0, 0, 1, 1], [], []>} : vector<16x128xbf16>, vector<128x512xbf16>, vector<16x512xf32> -> vector<16x512xf32>
    %154 = arith.addf %152, %153 : vector<16x512xf32>
    %155 = vector.extract_strided_slice %154 {offsets = [0, 0], sizes = [16, 128], strides = [1, 1]} : vector<16x512xf32> to vector<16x128xf32>
    %cst_70 = arith.constant 5.000000e-01 : f32
    %156 = vector.broadcast %cst_70 : f32 to vector<16x128xf32>
    %157 = arith.cmpf ogt, %155, %156 : vector<16x128xf32>
    %158 = vector.extract_strided_slice %154 {offsets = [0, 128], sizes = [16, 128], strides = [1, 1]} : vector<16x512xf32> to vector<16x128xf32>
    %cst_71 = arith.constant 5.000000e-01 : f32
    %159 = vector.broadcast %cst_71 : f32 to vector<16x128xf32>
    %160 = arith.cmpf ogt, %158, %159 : vector<16x128xf32>
    %161 = vector.extract_strided_slice %154 {offsets = [0, 256], sizes = [16, 128], strides = [1, 1]} : vector<16x512xf32> to vector<16x128xf32>
    %cst_72 = arith.constant 5.000000e-01 : f32
    %162 = vector.broadcast %cst_72 : f32 to vector<16x128xf32>
    %163 = arith.cmpf ogt, %161, %162 : vector<16x128xf32>
    %164 = vector.extract_strided_slice %154 {offsets = [0, 384], sizes = [16, 128], strides = [1, 1]} : vector<16x512xf32> to vector<16x128xf32>
    %cst_73 = arith.constant 5.000000e-01 : f32
    %165 = vector.broadcast %cst_73 : f32 to vector<16x128xf32>
    %166 = arith.cmpf ogt, %164, %165 : vector<16x128xf32>
    %cst_74 = arith.constant 3.000000e-01 : f32
    %167 = vector.broadcast %cst_74 : f32 to vector<16x128xf32>
    %168 = arith.mulf %167, %139 : vector<16x128xf32>
    %cst_75 = arith.constant 0.000000e+00 : f32
    %169 = vector.broadcast %cst_75 : f32 to vector<16x128xf32>
    %170 = arith.select %160, %168, %169 : vector<16x128xi1>, vector<16x128xf32>
    %171 = arith.andi %157, %163 : vector<16x128xi1>
    %172 = arith.extui %171 : vector<16x128xi1> to vector<16x128xi32>
    %173 = arith.sitofp %172 : vector<16x128xi32> to vector<16x128xf32>
    %174 = arith.addf %170, %173 : vector<16x128xf32>
    %cst_76 = arith.constant 5.000000e-01 : f32
    %175 = vector.broadcast %cst_76 : f32 to vector<16x128xf32>
    %176 = arith.cmpf ogt, %174, %175 : vector<16x128xf32>
    %177 = arith.andi %166, %176 : vector<16x128xi1>
    %178 = arith.extui %177 : vector<16x128xi1> to vector<16x128xi32>
    %179 = arith.sitofp %178 : vector<16x128xi32> to vector<16x128xf32>
    %180 = arith.truncf %179 : vector<16x128xf32> to vector<16x128xbf16>
    %181 = arith.index_cast %c3_i32 : i32 to index
    %c0_77 = arith.constant 0 : index
    %c0_78 = arith.constant 0 : index
    %182 = vector.load %arg6[%181, %c0_77, %c0_78] : memref<8x16x128xbf16, #tpu.memory_space<vmem>>, vector<1x16x128xbf16>
    %183 = vector.shape_cast %182 : vector<1x16x128xbf16> to vector<16x128xbf16>
    %184 = vector.shape_cast %180 : vector<16x128xbf16> to vector<1x16x128xbf16>
    tpu.vector_store %arg6[%181, %c0_77, %c0_78], %184 {strides = array<i32>} : memref<8x16x128xbf16, #tpu.memory_space<vmem>>, vector<1x16x128xbf16>,
    %c4_i32 = arith.constant 4 : i32
    %185 = arith.index_cast %c4_i32 : i32 to index
    %c0_79 = arith.constant 0 : index
    %c0_80 = arith.constant 0 : index
    %186 = vector.load %arg9[%185, %c0_79, %c0_80] : memref<8x16x512xf32, #tpu.memory_space<vmem>>, vector<1x16x512xf32>
    %187 = vector.shape_cast %186 : vector<1x16x512xf32> to vector<16x512xf32>
    %cst_81 = arith.constant dense<0.000000e+00> : vector<16x512xf32>
    %188 = tpu.matmul %180, %42, %cst_81 {dimension_numbers = #tpu.dot_dimension_numbers<[1], [0], [0], [1], [0, 0, 1, 1], [], []>} : vector<16x128xbf16>, vector<128x512xbf16>, vector<16x512xf32> -> vector<16x512xf32>
    %189 = arith.addf %187, %188 : vector<16x512xf32>
    %190 = vector.extract_strided_slice %189 {offsets = [0, 0], sizes = [16, 128], strides = [1, 1]} : vector<16x512xf32> to vector<16x128xf32>
    %cst_82 = arith.constant 5.000000e-01 : f32
    %191 = vector.broadcast %cst_82 : f32 to vector<16x128xf32>
    %192 = arith.cmpf ogt, %190, %191 : vector<16x128xf32>
    %193 = vector.extract_strided_slice %189 {offsets = [0, 128], sizes = [16, 128], strides = [1, 1]} : vector<16x512xf32> to vector<16x128xf32>
    %cst_83 = arith.constant 5.000000e-01 : f32
    %194 = vector.broadcast %cst_83 : f32 to vector<16x128xf32>
    %195 = arith.cmpf ogt, %193, %194 : vector<16x128xf32>
    %196 = vector.extract_strided_slice %189 {offsets = [0, 256], sizes = [16, 128], strides = [1, 1]} : vector<16x512xf32> to vector<16x128xf32>
    %cst_84 = arith.constant 5.000000e-01 : f32
    %197 = vector.broadcast %cst_84 : f32 to vector<16x128xf32>
    %198 = arith.cmpf ogt, %196, %197 : vector<16x128xf32>
    %199 = vector.extract_strided_slice %189 {offsets = [0, 384], sizes = [16, 128], strides = [1, 1]} : vector<16x512xf32> to vector<16x128xf32>
    %cst_85 = arith.constant 5.000000e-01 : f32
    %200 = vector.broadcast %cst_85 : f32 to vector<16x128xf32>
    %201 = arith.cmpf ogt, %199, %200 : vector<16x128xf32>
    %cst_86 = arith.constant 3.000000e-01 : f32
    %202 = vector.broadcast %cst_86 : f32 to vector<16x128xf32>
    %203 = arith.mulf %202, %174 : vector<16x128xf32>
    %cst_87 = arith.constant 0.000000e+00 : f32
    %204 = vector.broadcast %cst_87 : f32 to vector<16x128xf32>
    %205 = arith.select %195, %203, %204 : vector<16x128xi1>, vector<16x128xf32>
    %206 = arith.andi %192, %198 : vector<16x128xi1>
    %207 = arith.extui %206 : vector<16x128xi1> to vector<16x128xi32>
    %208 = arith.sitofp %207 : vector<16x128xi32> to vector<16x128xf32>
    %209 = arith.addf %205, %208 : vector<16x128xf32>
    %cst_88 = arith.constant 5.000000e-01 : f32
    %210 = vector.broadcast %cst_88 : f32 to vector<16x128xf32>
    %211 = arith.cmpf ogt, %209, %210 : vector<16x128xf32>
    %212 = arith.andi %201, %211 : vector<16x128xi1>
    %213 = arith.extui %212 : vector<16x128xi1> to vector<16x128xi32>
    %214 = arith.sitofp %213 : vector<16x128xi32> to vector<16x128xf32>
    %215 = arith.truncf %214 : vector<16x128xf32> to vector<16x128xbf16>
    %216 = arith.index_cast %c4_i32 : i32 to index
    %c0_89 = arith.constant 0 : index
    %c0_90 = arith.constant 0 : index
    %217 = vector.load %arg6[%216, %c0_89, %c0_90] : memref<8x16x128xbf16, #tpu.memory_space<vmem>>, vector<1x16x128xbf16>
    %218 = vector.shape_cast %217 : vector<1x16x128xbf16> to vector<16x128xbf16>
    %219 = vector.shape_cast %215 : vector<16x128xbf16> to vector<1x16x128xbf16>
    tpu.vector_store %arg6[%216, %c0_89, %c0_90], %219 {strides = array<i32>} : memref<8x16x128xbf16, #tpu.memory_space<vmem>>, vector<1x16x128xbf16>,
    %c5_i32 = arith.constant 5 : i32
    %220 = arith.index_cast %c5_i32 : i32 to index
    %c0_91 = arith.constant 0 : index
    %c0_92 = arith.constant 0 : index
    %221 = vector.load %arg9[%220, %c0_91, %c0_92] : memref<8x16x512xf32, #tpu.memory_space<vmem>>, vector<1x16x512xf32>
    %222 = vector.shape_cast %221 : vector<1x16x512xf32> to vector<16x512xf32>
    %cst_93 = arith.constant dense<0.000000e+00> : vector<16x512xf32>
    %223 = tpu.matmul %215, %42, %cst_93 {dimension_numbers = #tpu.dot_dimension_numbers<[1], [0], [0], [1], [0, 0, 1, 1], [], []>} : vector<16x128xbf16>, vector<128x512xbf16>, vector<16x512xf32> -> vector<16x512xf32>
    %224 = arith.addf %222, %223 : vector<16x512xf32>
    %225 = vector.extract_strided_slice %224 {offsets = [0, 0], sizes = [16, 128], strides = [1, 1]} : vector<16x512xf32> to vector<16x128xf32>
    %cst_94 = arith.constant 5.000000e-01 : f32
    %226 = vector.broadcast %cst_94 : f32 to vector<16x128xf32>
    %227 = arith.cmpf ogt, %225, %226 : vector<16x128xf32>
    %228 = vector.extract_strided_slice %224 {offsets = [0, 128], sizes = [16, 128], strides = [1, 1]} : vector<16x512xf32> to vector<16x128xf32>
    %cst_95 = arith.constant 5.000000e-01 : f32
    %229 = vector.broadcast %cst_95 : f32 to vector<16x128xf32>
    %230 = arith.cmpf ogt, %228, %229 : vector<16x128xf32>
    %231 = vector.extract_strided_slice %224 {offsets = [0, 256], sizes = [16, 128], strides = [1, 1]} : vector<16x512xf32> to vector<16x128xf32>
    %cst_96 = arith.constant 5.000000e-01 : f32
    %232 = vector.broadcast %cst_96 : f32 to vector<16x128xf32>
    %233 = arith.cmpf ogt, %231, %232 : vector<16x128xf32>
    %234 = vector.extract_strided_slice %224 {offsets = [0, 384], sizes = [16, 128], strides = [1, 1]} : vector<16x512xf32> to vector<16x128xf32>
    %cst_97 = arith.constant 5.000000e-01 : f32
    %235 = vector.broadcast %cst_97 : f32 to vector<16x128xf32>
    %236 = arith.cmpf ogt, %234, %235 : vector<16x128xf32>
    %cst_98 = arith.constant 3.000000e-01 : f32
    %237 = vector.broadcast %cst_98 : f32 to vector<16x128xf32>
    %238 = arith.mulf %237, %209 : vector<16x128xf32>
    %cst_99 = arith.constant 0.000000e+00 : f32
    %239 = vector.broadcast %cst_99 : f32 to vector<16x128xf32>
    %240 = arith.select %230, %238, %239 : vector<16x128xi1>, vector<16x128xf32>
    %241 = arith.andi %227, %233 : vector<16x128xi1>
    %242 = arith.extui %241 : vector<16x128xi1> to vector<16x128xi32>
    %243 = arith.sitofp %242 : vector<16x128xi32> to vector<16x128xf32>
    %244 = arith.addf %240, %243 : vector<16x128xf32>
    %cst_100 = arith.constant 5.000000e-01 : f32
    %245 = vector.broadcast %cst_100 : f32 to vector<16x128xf32>
    %246 = arith.cmpf ogt, %244, %245 : vector<16x128xf32>
    %247 = arith.andi %236, %246 : vector<16x128xi1>
    %248 = arith.extui %247 : vector<16x128xi1> to vector<16x128xi32>
    %249 = arith.sitofp %248 : vector<16x128xi32> to vector<16x128xf32>
    %250 = arith.truncf %249 : vector<16x128xf32> to vector<16x128xbf16>
    %251 = arith.index_cast %c5_i32 : i32 to index
    %c0_101 = arith.constant 0 : index
    %c0_102 = arith.constant 0 : index
    %252 = vector.load %arg6[%251, %c0_101, %c0_102] : memref<8x16x128xbf16, #tpu.memory_space<vmem>>, vector<1x16x128xbf16>
    %253 = vector.shape_cast %252 : vector<1x16x128xbf16> to vector<16x128xbf16>
    %254 = vector.shape_cast %250 : vector<16x128xbf16> to vector<1x16x128xbf16>
    tpu.vector_store %arg6[%251, %c0_101, %c0_102], %254 {strides = array<i32>} : memref<8x16x128xbf16, #tpu.memory_space<vmem>>, vector<1x16x128xbf16>,
    %c6_i32 = arith.constant 6 : i32
    %255 = arith.index_cast %c6_i32 : i32 to index
    %c0_103 = arith.constant 0 : index
    %c0_104 = arith.constant 0 : index
    %256 = vector.load %arg9[%255, %c0_103, %c0_104] : memref<8x16x512xf32, #tpu.memory_space<vmem>>, vector<1x16x512xf32>
    %257 = vector.shape_cast %256 : vector<1x16x512xf32> to vector<16x512xf32>
    %cst_105 = arith.constant dense<0.000000e+00> : vector<16x512xf32>
    %258 = tpu.matmul %250, %42, %cst_105 {dimension_numbers = #tpu.dot_dimension_numbers<[1], [0], [0], [1], [0, 0, 1, 1], [], []>} : vector<16x128xbf16>, vector<128x512xbf16>, vector<16x512xf32> -> vector<16x512xf32>
    %259 = arith.addf %257, %258 : vector<16x512xf32>
    %260 = vector.extract_strided_slice %259 {offsets = [0, 0], sizes = [16, 128], strides = [1, 1]} : vector<16x512xf32> to vector<16x128xf32>
    %cst_106 = arith.constant 5.000000e-01 : f32
    %261 = vector.broadcast %cst_106 : f32 to vector<16x128xf32>
    %262 = arith.cmpf ogt, %260, %261 : vector<16x128xf32>
    %263 = vector.extract_strided_slice %259 {offsets = [0, 128], sizes = [16, 128], strides = [1, 1]} : vector<16x512xf32> to vector<16x128xf32>
    %cst_107 = arith.constant 5.000000e-01 : f32
    %264 = vector.broadcast %cst_107 : f32 to vector<16x128xf32>
    %265 = arith.cmpf ogt, %263, %264 : vector<16x128xf32>
    %266 = vector.extract_strided_slice %259 {offsets = [0, 256], sizes = [16, 128], strides = [1, 1]} : vector<16x512xf32> to vector<16x128xf32>
    %cst_108 = arith.constant 5.000000e-01 : f32
    %267 = vector.broadcast %cst_108 : f32 to vector<16x128xf32>
    %268 = arith.cmpf ogt, %266, %267 : vector<16x128xf32>
    %269 = vector.extract_strided_slice %259 {offsets = [0, 384], sizes = [16, 128], strides = [1, 1]} : vector<16x512xf32> to vector<16x128xf32>
    %cst_109 = arith.constant 5.000000e-01 : f32
    %270 = vector.broadcast %cst_109 : f32 to vector<16x128xf32>
    %271 = arith.cmpf ogt, %269, %270 : vector<16x128xf32>
    %cst_110 = arith.constant 3.000000e-01 : f32
    %272 = vector.broadcast %cst_110 : f32 to vector<16x128xf32>
    %273 = arith.mulf %272, %244 : vector<16x128xf32>
    %cst_111 = arith.constant 0.000000e+00 : f32
    %274 = vector.broadcast %cst_111 : f32 to vector<16x128xf32>
    %275 = arith.select %265, %273, %274 : vector<16x128xi1>, vector<16x128xf32>
    %276 = arith.andi %262, %268 : vector<16x128xi1>
    %277 = arith.extui %276 : vector<16x128xi1> to vector<16x128xi32>
    %278 = arith.sitofp %277 : vector<16x128xi32> to vector<16x128xf32>
    %279 = arith.addf %275, %278 : vector<16x128xf32>
    %cst_112 = arith.constant 5.000000e-01 : f32
    %280 = vector.broadcast %cst_112 : f32 to vector<16x128xf32>
    %281 = arith.cmpf ogt, %279, %280 : vector<16x128xf32>
    %282 = arith.andi %271, %281 : vector<16x128xi1>
    %283 = arith.extui %282 : vector<16x128xi1> to vector<16x128xi32>
    %284 = arith.sitofp %283 : vector<16x128xi32> to vector<16x128xf32>
    %285 = arith.truncf %284 : vector<16x128xf32> to vector<16x128xbf16>
    %286 = arith.index_cast %c6_i32 : i32 to index
    %c0_113 = arith.constant 0 : index
    %c0_114 = arith.constant 0 : index
    %287 = vector.load %arg6[%286, %c0_113, %c0_114] : memref<8x16x128xbf16, #tpu.memory_space<vmem>>, vector<1x16x128xbf16>
    %288 = vector.shape_cast %287 : vector<1x16x128xbf16> to vector<16x128xbf16>
    %289 = vector.shape_cast %285 : vector<16x128xbf16> to vector<1x16x128xbf16>
    tpu.vector_store %arg6[%286, %c0_113, %c0_114], %289 {strides = array<i32>} : memref<8x16x128xbf16, #tpu.memory_space<vmem>>, vector<1x16x128xbf16>,
    %c7_i32 = arith.constant 7 : i32
    %290 = arith.index_cast %c7_i32 : i32 to index
    %c0_115 = arith.constant 0 : index
    %c0_116 = arith.constant 0 : index
    %291 = vector.load %arg9[%290, %c0_115, %c0_116] : memref<8x16x512xf32, #tpu.memory_space<vmem>>, vector<1x16x512xf32>
    %292 = vector.shape_cast %291 : vector<1x16x512xf32> to vector<16x512xf32>
    %cst_117 = arith.constant dense<0.000000e+00> : vector<16x512xf32>
    %293 = tpu.matmul %285, %42, %cst_117 {dimension_numbers = #tpu.dot_dimension_numbers<[1], [0], [0], [1], [0, 0, 1, 1], [], []>} : vector<16x128xbf16>, vector<128x512xbf16>, vector<16x512xf32> -> vector<16x512xf32>
    %294 = arith.addf %292, %293 : vector<16x512xf32>
    %295 = vector.extract_strided_slice %294 {offsets = [0, 0], sizes = [16, 128], strides = [1, 1]} : vector<16x512xf32> to vector<16x128xf32>
    %cst_118 = arith.constant 5.000000e-01 : f32
    %296 = vector.broadcast %cst_118 : f32 to vector<16x128xf32>
    %297 = arith.cmpf ogt, %295, %296 : vector<16x128xf32>
    %298 = vector.extract_strided_slice %294 {offsets = [0, 128], sizes = [16, 128], strides = [1, 1]} : vector<16x512xf32> to vector<16x128xf32>
    %cst_119 = arith.constant 5.000000e-01 : f32
    %299 = vector.broadcast %cst_119 : f32 to vector<16x128xf32>
    %300 = arith.cmpf ogt, %298, %299 : vector<16x128xf32>
    %301 = vector.extract_strided_slice %294 {offsets = [0, 256], sizes = [16, 128], strides = [1, 1]} : vector<16x512xf32> to vector<16x128xf32>
    %cst_120 = arith.constant 5.000000e-01 : f32
    %302 = vector.broadcast %cst_120 : f32 to vector<16x128xf32>
    %303 = arith.cmpf ogt, %301, %302 : vector<16x128xf32>
    %304 = vector.extract_strided_slice %294 {offsets = [0, 384], sizes = [16, 128], strides = [1, 1]} : vector<16x512xf32> to vector<16x128xf32>
    %cst_121 = arith.constant 5.000000e-01 : f32
    %305 = vector.broadcast %cst_121 : f32 to vector<16x128xf32>
    %306 = arith.cmpf ogt, %304, %305 : vector<16x128xf32>
    %cst_122 = arith.constant 3.000000e-01 : f32
    %307 = vector.broadcast %cst_122 : f32 to vector<16x128xf32>
    %308 = arith.mulf %307, %279 : vector<16x128xf32>
    %cst_123 = arith.constant 0.000000e+00 : f32
    %309 = vector.broadcast %cst_123 : f32 to vector<16x128xf32>
    %310 = arith.select %300, %308, %309 : vector<16x128xi1>, vector<16x128xf32>
    %311 = arith.andi %297, %303 : vector<16x128xi1>
    %312 = arith.extui %311 : vector<16x128xi1> to vector<16x128xi32>
    %313 = arith.sitofp %312 : vector<16x128xi32> to vector<16x128xf32>
    %314 = arith.addf %310, %313 : vector<16x128xf32>
    %cst_124 = arith.constant 5.000000e-01 : f32
    %315 = vector.broadcast %cst_124 : f32 to vector<16x128xf32>
    %316 = arith.cmpf ogt, %314, %315 : vector<16x128xf32>
    %317 = arith.andi %306, %316 : vector<16x128xi1>
    %318 = arith.extui %317 : vector<16x128xi1> to vector<16x128xi32>
    %319 = arith.sitofp %318 : vector<16x128xi32> to vector<16x128xf32>
    %320 = arith.truncf %319 : vector<16x128xf32> to vector<16x128xbf16>
    %321 = arith.index_cast %c7_i32 : i32 to index
    %c0_125 = arith.constant 0 : index
    %c0_126 = arith.constant 0 : index
    %322 = vector.load %arg6[%321, %c0_125, %c0_126] : memref<8x16x128xbf16, #tpu.memory_space<vmem>>, vector<1x16x128xbf16>
    %323 = vector.shape_cast %322 : vector<1x16x128xbf16> to vector<16x128xbf16>
    %324 = vector.shape_cast %320 : vector<16x128xbf16> to vector<1x16x128xbf16>
    tpu.vector_store %arg6[%321, %c0_125, %c0_126], %324 {strides = array<i32>} : memref<8x16x128xbf16, #tpu.memory_space<vmem>>, vector<1x16x128xbf16>,
    %c8_i32 = arith.constant 8 : i32
    %c0_127 = arith.constant 0 : index
    %c0_128 = arith.constant 0 : index
    %325 = vector.load %arg7[%c0_127, %c0_128] : memref<16x128xbf16, #tpu.memory_space<vmem>>, vector<16x128xbf16>
    tpu.vector_store %arg7[%c0_127, %c0_128], %320 {strides = array<i32>} : memref<16x128xbf16, #tpu.memory_space<vmem>>, vector<16x128xbf16>,
    %c0_129 = arith.constant 0 : index
    %c0_130 = arith.constant 0 : index
    %326 = vector.load %arg8[%c0_129, %c0_130] : memref<16x128xf32, #tpu.memory_space<vmem>>, vector<16x128xf32>
    tpu.vector_store %arg8[%c0_129, %c0_130], %314 {strides = array<i32>} : memref<16x128xf32, #tpu.memory_space<vmem>>, vector<16x128xf32>,
    return
  }
  func.func @transform_0(%arg0: i32, %arg1: i32) -> (i32, i32, i32) {
    %c0_i32 = arith.constant 0 : i32
    %c0_i32_0 = arith.constant 0 : i32
    return %arg1, %arg0, %c0_i32 : i32, i32, i32
  }
  func.func @transform_1(%arg0: i32, %arg1: i32) -> (i32, i32) {
    %c0_i32 = arith.constant 0 : i32
    %c0_i32_0 = arith.constant 0 : i32
    %c0_i32_1 = arith.constant 0 : i32
    return %c0_i32, %c0_i32_0 : i32, i32
  }
  func.func @transform_2(%arg0: i32, %arg1: i32) -> (i32, i32) {
    %c0_i32 = arith.constant 0 : i32
    %c0_i32_0 = arith.constant 0 : i32
    %c0_i32_1 = arith.constant 0 : i32
    return %c0_i32, %c0_i32_0 : i32, i32
  }
  func.func @transform_3(%arg0: i32, %arg1: i32) -> (i32, i32) {
    %c0_i32 = arith.constant 0 : i32
    %c0_i32_0 = arith.constant 0 : i32
    %c0_i32_1 = arith.constant 0 : i32
    return %c0_i32, %c0_i32_0 : i32, i32
  }
  func.func @transform_4(%arg0: i32, %arg1: i32) -> (i32, i32, i32) {
    %c0_i32 = arith.constant 0 : i32
    %c0_i32_0 = arith.constant 0 : i32
    return %arg1, %arg0, %c0_i32 : i32, i32, i32
  }
}

</mosaic_0001>

<llo_original>
// kernel: tpu_custom_call.1
$region0: #{tpu_custom_call.1}
  #allocation0 [shape = 'u32[]', space=smem, size = 0x4, offset = 0x4, fixed_abs, tag = 'smem constant byte address 0x4 - core index']
  #allocation1 [shape = 'u32[144,128]{1,0:T(1,128)}', space=vmem, size = 0x12000, scoped, tag = 'internal scratch']
  #allocation2 [shape = 'bf16[16,128]{1,0:T(8,128)(2,1)}', space=vmem, size = 0x1000, scoped, tag = 'scratch operand']
  #allocation3 [shape = 'f32[16,128]{1,0:T(8,128)}', space=vmem, size = 0x2000, scoped, tag = 'scratch operand']
  #allocation4 [shape = 'f32[8,16,512]{2,1,0:T(8,128)}', space=vmem, size = 0x40000, scoped, tag = 'scratch operand']
  %s0 = inlined_call_operand.vmem [shape: bf16[8,16,8], index: 0, kind: input, shape index: {}]
  %s1 = inlined_call_operand.vmem [shape: bf16[8,512], index: 1, kind: input, shape index: {}]
  %s2 = inlined_call_operand.hbm [shape: bf16[128,512], index: 2, kind: input, shape index: {}]
  %s3 = inlined_call_operand.vmem [shape: f32[1,512], index: 3, kind: input, shape index: {}]
  %s4 = inlined_call_operand.hbm [shape: bf16[8,16,128], index: 4, kind: output, shape index: {}]
  %s5 = sld [smem:[#allocation0]]
  $region34: #{tpu_custom_call.1} parent=0
    _
  %s7 = ssub.s32 1, %s5
  %s8 = scalar_select 0, %s7, %s5
  $region1: #{tpu_custom_call.1} parent=0
    #allocation5 [shape = 'u8[131072]{0}', space=vmem, size = 0x20000, scoped, tag = 'input window, operand 2, single buffered']
    #allocation6 [shape = 's32[1]{0}', space=sflag, size = 0x4, scoped, tag = 'scoped memory for tpu_custom_call.1']
    #allocation7 [shape = 's32[1]{0}', space=sflag, size = 0x4, scoped, tag = 'scoped memory for tpu_custom_call.1']
    #allocation8 [shape = 'u8[32768]{0}', space=vmem, size = 0x8000, scoped, tag = 'output window, operand 0, single buffered']
    %9 = vsyncpa [#allocation6], 0
    %10 = vsyncpa [#allocation7], 0
    // Predicated region
    $region2: #{tpu_custom_call.1} parent=1 // pred_check
      _
    $region3: #{tpu_custom_call.1} parent=1 // pred_check_branch
      %12 = sbr.rel (0) target = $region5
    $region4: #{tpu_custom_call.1} parent=1 // pred_region
      _
    $region5: #{tpu_custom_call.1} parent=1 // pred_fallthru
      _
    // Predicated region
    $region6: #{tpu_custom_call.1} parent=1 // pred_check
      _
    $region7: #{tpu_custom_call.1} parent=1 // pred_check_branch
      %14 = sbr.rel (0) target = $region9
    $region8: #{tpu_custom_call.1} parent=1 // pred_region
      _
    $region9: #{tpu_custom_call.1} parent=1 // pred_fallthru
      _
    // Predicated region
    $region10: #{tpu_custom_call.1} parent=1 // pred_check
      _
    $region11: #{tpu_custom_call.1} parent=1 // pred_check_branch
      %16 = sbr.rel (0) target = $region13
    $region12: #{tpu_custom_call.1} parent=1 // pred_region
      %s18 = ssub.s32 4096, 4096
      %19 = vsyncadd [#allocation6], %s18
      %s20 = sshll.u32 [#allocation5], 4
      %s21 = int_to_ptr.vmem [resolvable:$true] %s20
      %26 = dma.hbm_to_vmem [thread:$0]  %s2, 4096, %s21, [#allocation6], 256, 256, 16
    $region13: #{tpu_custom_call.1} parent=1 // pred_fallthru
      _
    // Predicated region
    $region14: #{tpu_custom_call.1} parent=1 // pred_check
      _
    $region15: #{tpu_custom_call.1} parent=1 // pred_check_branch
      %28 = sbr.rel (0) target = $region17
    $region16: #{tpu_custom_call.1} parent=1 // pred_region
      _
    $region17: #{tpu_custom_call.1} parent=1 // pred_fallthru
      _
    // Predicated region
    $region18: #{tpu_custom_call.1} parent=1 // pred_check
      _
    $region19: #{tpu_custom_call.1} parent=1 // pred_check_branch
      %30 = sbr.rel (0) target = $region21
    $region20: #{tpu_custom_call.1} parent=1 // pred_region
      %31 = dma.done [#allocation6], 4096
    $region21: #{tpu_custom_call.1} parent=1 // pred_fallthru
      _
    %p33 = scmp.eq.s32.totalorder 0, 0
    // Predicated region
    $region22: #{tpu_custom_call.1} parent=1 // pred_check
      %p34 = pneg %p33
    $region23: #{tpu_custom_call.1} parent=1 // pred_check_branch
      %36 = sbr.rel (%p34) target = $region25
    $region24: #{tpu_custom_call.1} parent=1 // pred_region
      %37 = vst [vmem:[#allocation2] sm:$0xf] 0
      %38 = vst [vmem:[#allocation2 + $0x4] sm:$0xf] 0
      %39 = vst [vmem:[#allocation3] sm:$0xff] 0.0
      %40 = vst [vmem:[#allocation3 + $0x8] sm:$0xff] 0.0
    $region25: #{tpu_custom_call.1} parent=1 // pred_fallthru
      _
    %v41 = vld [vmem:[%s0] sm:$0xf]
    %v42 = vld [vmem:[%s0 + $0x4] sm:$0xf]
    %v43 = vld [vmem:[%s0 + $0x8] sm:$0xf]
    %v44 = vld [vmem:[%s0 + $0xc] sm:$0xf]
    %v45 = vld [vmem:[%s0 + $0x10] sm:$0xf]
    %v46 = vld [vmem:[%s0 + $0x14] sm:$0xf]
    %v47 = vld [vmem:[%s0 + $0x18] sm:$0xf]
    %v48 = vld [vmem:[%s0 + $0x1c] sm:$0xf]
    %v49 = vld [vmem:[%s0 + $0x20] sm:$0xf]
    %v50 = vld [vmem:[%s0 + $0x24] sm:$0xf]
    %v51 = vld [vmem:[%s0 + $0x28] sm:$0xf]
    %v52 = vld [vmem:[%s0 + $0x2c] sm:$0xf]
    %v53 = vld [vmem:[%s0 + $0x30] sm:$0xf]
    %v54 = vld [vmem:[%s0 + $0x34] sm:$0xf]
    %v55 = vld [vmem:[%s0 + $0x38] sm:$0xf]
    %v56 = vld [vmem:[%s0 + $0x3c] sm:$0xf]
    %v57 = vld [vmem:[%s1] sm:$0xff]
    %v58 = vld [vmem:[%s1 + $0x8] sm:$0xff]
    %v59 = vld [vmem:[%s3] sm:$0xf]
    %v61 = vlaneseq
    %v62 = vshrl.u32 %v61, 7
    %v63 = vsub.s32 0, %v62
    %v64 = vrot.slane %v59, %v63
    %v65 = vlaneseq
    %v66 = vshrl.u32 %v65, 7
    %v67 = vsub.s32 1, %v66
    %v68 = vrot.slane %v59, %v67
    %v69 = vlaneseq
    %v70 = vshrl.u32 %v69, 7
    %v71 = vsub.s32 2, %v70
    %v72 = vrot.slane %v59, %v71
    %v73 = vlaneseq
    %v74 = vshrl.u32 %v73, 7
    %v75 = vsub.s32 3, %v74
    %v76 = vrot.slane %v59, %v75
    %v97 = vunpack.c.l.b16 %v41
    %v98 = vunpack.c.l.b16 %v42
    %v99 = vunpack.c.l.b16 %v43
    %v100 = vunpack.c.l.b16 %v44
    %v101 = vunpack.c.l.b16 %v45
    %v102 = vunpack.c.l.b16 %v46
    %v103 = vunpack.c.l.b16 %v47
    %v104 = vunpack.c.l.b16 %v48
    %v105 = vunpack.c.l.b16 %v49
    %v106 = vunpack.c.l.b16 %v50
    %v107 = vunpack.c.l.b16 %v51
    %v108 = vunpack.c.l.b16 %v52
    %v109 = vunpack.c.l.b16 %v53
    %v110 = vunpack.c.l.b16 %v54
    %v111 = vunpack.c.l.b16 %v55
    %v112 = vunpack.c.l.b16 %v56
    %v113 = vpack.c.b16 %v98, %v97
    %v114 = vpack.c.b16 %v100, %v99
    %v115 = vpack.c.b16 %v102, %v101
    %v116 = vpack.c.b16 %v104, %v103
    %v117 = vpack.c.b16 %v106, %v105
    %v118 = vpack.c.b16 %v108, %v107
    %v119 = vpack.c.b16 %v110, %v109
    %v120 = vpack.c.b16 %v112, %v111
    %v123 = vunpack.c.l.b16 %v57
    %v124 = vunpack.c.h.b16 %v57
    %v125 = vunpack.c.l.b16 %v58
    %v126 = vunpack.c.h.b16 %v58
    %v127 = vpack.c.b16 %v123, %v123
    %v128 = vpack.c.b16 %v124, %v124
    %v129 = vpack.c.b16 %v125, %v125
    %v130 = vpack.c.b16 %v126, %v126
    %vm131 = vcmask 64512
    %v133 = vsel %vm131, %v113, 0
    %v136 = vsel %vm131, %v114, 0
    %v139 = vsel %vm131, %v115, 0
    %v142 = vsel %vm131, %v116, 0
    %v145 = vsel %vm131, %v117, 0
    %v148 = vsel %vm131, %v118, 0
    %v151 = vsel %vm131, %v119, 0
    %v154 = vsel %vm131, %v120, 0
    %vm156 = vcmask 1043456
    %v158 = vsel %vm156, %v127, 0
    %v161 = vsel %vm156, %v128, 0
    %v164 = vsel %vm156, %v129, 0
    %v167 = vsel %vm156, %v130, 0
    %169 = vmatprep.subr.bf16.mxu0 0
    %170 = vmatpush1.bf16.msra.mxu0 0
    %171 = vmatprep.subr.bf16.mxu0 0
    %172 = vmatpush1.bf16.msra.mxu0 0
    %173 = vmatprep.subr.bf16.mxu0 0
    %174 = vmatpush1.bf16.msra.mxu0 0
    %175 = vmatprep.subr.bf16.mxu0 0
    %176 = vmatpush1.bf16.msra.mxu0 0
    %177 = vmatprep.subr.bf16.mxu0 0
    %178 = vmatpush1.bf16.msra.mxu0 0
    %179 = vmatprep.subr.bf16.mxu0 0
    %180 = vmatpush1.bf16.msra.mxu0 0
    %181 = vmatprep.subr.bf16.mxu0 0
    %182 = vmatpush1.bf16.msra.mxu0 0
    %183 = vmatprep.subr.bf16.mxu0 %v161
    %184 = vmatpush1.bf16.msra.mxu0 %v158
    %185 = vmatprep.subr.bf16.mxu0 0
    %186 = vmatpush2.bf16.msra.mxu0 0
    %187 = vmatprep.subr.bf16.mxu0 0
    %188 = vmatpush2.bf16.msra.mxu0 0
    %189 = vmatprep.subr.bf16.mxu0 0
    %190 = vmatpush2.bf16.msra.mxu0 0
    %191 = vmatprep.subr.bf16.mxu0 0
    %192 = vmatpush2.bf16.msra.mxu0 0
    %193 = vmatprep.subr.bf16.mxu0 0
    %194 = vmatpush2.bf16.msra.mxu0 0
    %195 = vmatprep.subr.bf16.mxu0 0
    %196 = vmatpush2.bf16.msra.mxu0 0
    %197 = vmatprep.subr.bf16.mxu0 0
    %198 = vmatpush2.bf16.msra.mxu0 0
    %199 = vmatprep.subr.bf16.mxu0 0
    %200 = vmatpush2.bf16.msra.mxu0 0
    %201 = vmatprep.mubr.bf16.mxu0 0
    %202 = vmatmul.mubr.bf16.gmra.mxu0 %v133
    %v203 = vpop.f32.mrf.mxu0
    %v204 = vadd.f32 %v64, %v203
    %v205 = vpop.f32.mrf.mxu0
    %v206 = vadd.f32 %v68, %v205
    %v207 = vpop.f32.mrf.mxu0
    %v208 = vadd.f32 %v64, %v207
    %v209 = vpop.f32.mrf.mxu0
    %v210 = vadd.f32 %v68, %v209
    %211 = vmatprep.mubr.bf16.mxu0 0
    %212 = vmatmul.mubr.bf16.gmra.mxu0 %v136
    %v213 = vpop.f32.mrf.mxu0
    %v214 = vadd.f32 %v64, %v213
    %v215 = vpop.f32.mrf.mxu0
    %v216 = vadd.f32 %v68, %v215
    %v217 = vpop.f32.mrf.mxu0
    %v218 = vadd.f32 %v64, %v217
    %v219 = vpop.f32.mrf.mxu0
    %v220 = vadd.f32 %v68, %v219
    %221 = vmatprep.mubr.bf16.mxu0 0
    %222 = vmatmul.mubr.bf16.gmra.mxu0 %v139
    %v223 = vpop.f32.mrf.mxu0
    %v224 = vadd.f32 %v64, %v223
    %v225 = vpop.f32.mrf.mxu0
    %v226 = vadd.f32 %v68, %v225
    %v227 = vpop.f32.mrf.mxu0
    %v228 = vadd.f32 %v64, %v227
    %v229 = vpop.f32.mrf.mxu0
    %v230 = vadd.f32 %v68, %v229
    %231 = vmatprep.mubr.bf16.mxu0 0
    %232 = vmatmul.mubr.bf16.gmra.mxu0 %v142
    %v233 = vpop.f32.mrf.mxu0
    %v234 = vadd.f32 %v64, %v233
    %v235 = vpop.f32.mrf.mxu0
    %v236 = vadd.f32 %v68, %v235
    %v237 = vpop.f32.mrf.mxu0
    %v238 = vadd.f32 %v64, %v237
    %v239 = vpop.f32.mrf.mxu0
    %v240 = vadd.f32 %v68, %v239
    %241 = vmatprep.mubr.bf16.mxu0 0
    %242 = vmatmul.mubr.bf16.gmra.mxu0 %v145
    %v243 = vpop.f32.mrf.mxu0
    %v244 = vadd.f32 %v64, %v243
    %v245 = vpop.f32.mrf.mxu0
    %v246 = vadd.f32 %v68, %v245
    %v247 = vpop.f32.mrf.mxu0
    %v248 = vadd.f32 %v64, %v247
    %v249 = vpop.f32.mrf.mxu0
    %v250 = vadd.f32 %v68, %v249
    %251 = vmatprep.mubr.bf16.mxu0 0
    %252 = vmatmul.mubr.bf16.gmra.mxu0 %v148
    %v253 = vpop.f32.mrf.mxu0
    %v254 = vadd.f32 %v64, %v253
    %v255 = vpop.f32.mrf.mxu0
    %v256 = vadd.f32 %v68, %v255
    %v257 = vpop.f32.mrf.mxu0
    %v258 = vadd.f32 %v64, %v257
    %v259 = vpop.f32.mrf.mxu0
    %v260 = vadd.f32 %v68, %v259
    %261 = vmatprep.mubr.bf16.mxu0 0
    %262 = vmatmul.mubr.bf16.gmra.mxu0 %v151
    %v263 = vpop.f32.mrf.mxu0
    %v264 = vadd.f32 %v64, %v263
    %v265 = vpop.f32.mrf.mxu0
    %v266 = vadd.f32 %v68, %v265
    %v267 = vpop.f32.mrf.mxu0
    %v268 = vadd.f32 %v64, %v267
    %v269 = vpop.f32.mrf.mxu0
    %v270 = vadd.f32 %v68, %v269
    %271 = vmatprep.mubr.bf16.mxu0 0
    %272 = vmatmul.mubr.bf16.gmra.mxu0 %v154
    %v273 = vpop.f32.mrf.mxu0
    %v274 = vadd.f32 %v64, %v273
    %v275 = vpop.f32.mrf.mxu0
    %v276 = vadd.f32 %v68, %v275
    %v277 = vpop.f32.mrf.mxu0
    %v278 = vadd.f32 %v64, %v277
    %v279 = vpop.f32.mrf.mxu0
    %v280 = vadd.f32 %v68, %v279
    %281 = vdwg.mxu0
    %282 = vmatprep.subr.bf16.mxu0 0
    %283 = vmatpush1.bf16.msra.mxu0 0
    %284 = vmatprep.subr.bf16.mxu0 0
    %285 = vmatpush1.bf16.msra.mxu0 0
    %286 = vmatprep.subr.bf16.mxu0 0
    %287 = vmatpush1.bf16.msra.mxu0 0
    %288 = vmatprep.subr.bf16.mxu0 0
    %289 = vmatpush1.bf16.msra.mxu0 0
    %290 = vmatprep.subr.bf16.mxu0 0
    %291 = vmatpush1.bf16.msra.mxu0 0
    %292 = vmatprep.subr.bf16.mxu0 0
    %293 = vmatpush1.bf16.msra.mxu0 0
    %294 = vmatprep.subr.bf16.mxu0 0
    %295 = vmatpush1.bf16.msra.mxu0 0
    %296 = vmatprep.subr.bf16.mxu0 %v167
    %297 = vmatpush1.bf16.msra.mxu0 %v164
    %298 = vmatprep.subr.bf16.mxu0 0
    %299 = vmatpush2.bf16.msra.mxu0 0
    %300 = vmatprep.subr.bf16.mxu0 0
    %301 = vmatpush2.bf16.msra.mxu0 0
    %302 = vmatprep.subr.bf16.mxu0 0
    %303 = vmatpush2.bf16.msra.mxu0 0
    %304 = vmatprep.subr.bf16.mxu0 0
    %305 = vmatpush2.bf16.msra.mxu0 0
    %306 = vmatprep.subr.bf16.mxu0 0
    %307 = vmatpush2.bf16.msra.mxu0 0
    %308 = vmatprep.subr.bf16.mxu0 0
    %309 = vmatpush2.bf16.msra.mxu0 0
    %310 = vmatprep.subr.bf16.mxu0 0
    %311 = vmatpush2.bf16.msra.mxu0 0
    %312 = vmatprep.subr.bf16.mxu0 0
    %313 = vmatpush2.bf16.msra.mxu0 0
    %314 = vmatprep.mubr.bf16.mxu0 0
    %315 = vmatmul.mubr.bf16.gmra.mxu0 %v133
    %v316 = vpop.f32.mrf.mxu0
    %v317 = vadd.f32 %v72, %v316
    %v318 = vpop.f32.mrf.mxu0
    %v319 = vadd.f32 %v76, %v318
    %v320 = vpop.f32.mrf.mxu0
    %v321 = vadd.f32 %v72, %v320
    %v322 = vpop.f32.mrf.mxu0
    %v323 = vadd.f32 %v76, %v322
    %324 = vmatprep.mubr.bf16.mxu0 0
    %325 = vmatmul.mubr.bf16.gmra.mxu0 %v136
    %v326 = vpop.f32.mrf.mxu0
    %v327 = vadd.f32 %v72, %v326
    %v328 = vpop.f32.mrf.mxu0
    %v329 = vadd.f32 %v76, %v328
    %v330 = vpop.f32.mrf.mxu0
    %v331 = vadd.f32 %v72, %v330
    %v332 = vpop.f32.mrf.mxu0
    %v333 = vadd.f32 %v76, %v332
    %334 = vmatprep.mubr.bf16.mxu0 0
    %335 = vmatmul.mubr.bf16.gmra.mxu0 %v139
    %v336 = vpop.f32.mrf.mxu0
    %v337 = vadd.f32 %v72, %v336
    %v338 = vpop.f32.mrf.mxu0
    %v339 = vadd.f32 %v76, %v338
    %v340 = vpop.f32.mrf.mxu0
    %v341 = vadd.f32 %v72, %v340
    %v342 = vpop.f32.mrf.mxu0
    %v343 = vadd.f32 %v76, %v342
    %344 = vmatprep.mubr.bf16.mxu0 0
    %345 = vmatmul.mubr.bf16.gmra.mxu0 %v142
    %v346 = vpop.f32.mrf.mxu0
    %v347 = vadd.f32 %v72, %v346
    %v348 = vpop.f32.mrf.mxu0
    %v349 = vadd.f32 %v76, %v348
    %v350 = vpop.f32.mrf.mxu0
    %v351 = vadd.f32 %v72, %v350
    %v352 = vpop.f32.mrf.mxu0
    %v353 = vadd.f32 %v76, %v352
    %354 = vmatprep.mubr.bf16.mxu0 0
    %355 = vmatmul.mubr.bf16.gmra.mxu0 %v145
    %v356 = vpop.f32.mrf.mxu0
    %v357 = vadd.f32 %v72, %v356
    %v358 = vpop.f32.mrf.mxu0
    %v359 = vadd.f32 %v76, %v358
    %v360 = vpop.f32.mrf.mxu0
    %v361 = vadd.f32 %v72, %v360
    %v362 = vpop.f32.mrf.mxu0
    %v363 = vadd.f32 %v76, %v362
    %364 = vmatprep.mubr.bf16.mxu0 0
    %365 = vmatmul.mubr.bf16.gmra.mxu0 %v148
    %v366 = vpop.f32.mrf.mxu0
    %v367 = vadd.f32 %v72, %v366
    %v368 = vpop.f32.mrf.mxu0
    %v369 = vadd.f32 %v76, %v368
    %v370 = vpop.f32.mrf.mxu0
    %v371 = vadd.f32 %v72, %v370
    %v372 = vpop.f32.mrf.mxu0
    %v373 = vadd.f32 %v76, %v372
    %374 = vmatprep.mubr.bf16.mxu0 0
    %375 = vmatmul.mubr.bf16.gmra.mxu0 %v151
    %v376 = vpop.f32.mrf.mxu0
    %v377 = vadd.f32 %v72, %v376
    %v378 = vpop.f32.mrf.mxu0
    %v379 = vadd.f32 %v76, %v378
    %v380 = vpop.f32.mrf.mxu0
    %v381 = vadd.f32 %v72, %v380
    %v382 = vpop.f32.mrf.mxu0
    %v383 = vadd.f32 %v76, %v382
    %384 = vmatprep.mubr.bf16.mxu0 0
    %385 = vmatmul.mubr.bf16.gmra.mxu0 %v154
    %v386 = vpop.f32.mrf.mxu0
    %v387 = vadd.f32 %v72, %v386
    %v388 = vpop.f32.mrf.mxu0
    %v389 = vadd.f32 %v76, %v388
    %v390 = vpop.f32.mrf.mxu0
    %v391 = vadd.f32 %v72, %v390
    %v392 = vpop.f32.mrf.mxu0
    %v393 = vadd.f32 %v76, %v392
    %394 = vdwg.mxu0
    %395 = vst [vmem:[#allocation4] sm:$0xff] %v204
    %396 = vst [vmem:[#allocation4 + $0x8] sm:$0xff] %v206
    %397 = vst [vmem:[#allocation4 + $0x10] sm:$0xff] %v317
    %398 = vst [vmem:[#allocation4 + $0x18] sm:$0xff] %v319
    %399 = vst [vmem:[#allocation4 + $0x20] sm:$0xff] %v208
    %400 = vst [vmem:[#allocation4 + $0x28] sm:$0xff] %v210
    %401 = vst [vmem:[#allocation4 + $0x30] sm:$0xff] %v321
    %402 = vst [vmem:[#allocation4 + $0x38] sm:$0xff] %v323
    %s403 = scalar_lea.vmem [#allocation4], 64
    %404 = vst [vmem:[%s403] sm:$0xff] %v214
    %405 = vst [vmem:[%s403 + $0x8] sm:$0xff] %v216
    %406 = vst [vmem:[%s403 + $0x10] sm:$0xff] %v327
    %407 = vst [vmem:[%s403 + $0x18] sm:$0xff] %v329
    %408 = vst [vmem:[%s403 + $0x20] sm:$0xff] %v218
    %409 = vst [vmem:[%s403 + $0x28] sm:$0xff] %v220
    %410 = vst [vmem:[%s403 + $0x30] sm:$0xff] %v331
    %411 = vst [vmem:[%s403 + $0x38] sm:$0xff] %v333
    %s412 = scalar_lea.vmem [#allocation4], 128
    %413 = vst [vmem:[%s412] sm:$0xff] %v224
    %414 = vst [vmem:[%s412 + $0x8] sm:$0xff] %v226
    %415 = vst [vmem:[%s412 + $0x10] sm:$0xff] %v337
    %416 = vst [vmem:[%s412 + $0x18] sm:$0xff] %v339
    %417 = vst [vmem:[%s412 + $0x20] sm:$0xff] %v228
    %418 = vst [vmem:[%s412 + $0x28] sm:$0xff] %v230
    %419 = vst [vmem:[%s412 + $0x30] sm:$0xff] %v341
    %420 = vst [vmem:[%s412 + $0x38] sm:$0xff] %v343
    %s421 = scalar_lea.vmem [#allocation4], 192
    %422 = vst [vmem:[%s421] sm:$0xff] %v234
    %423 = vst [vmem:[%s421 + $0x8] sm:$0xff] %v236
    %424 = vst [vmem:[%s421 + $0x10] sm:$0xff] %v347
    %425 = vst [vmem:[%s421 + $0x18] sm:$0xff] %v349
    %426 = vst [vmem:[%s421 + $0x20] sm:$0xff] %v238
    %427 = vst [vmem:[%s421 + $0x28] sm:$0xff] %v240
    %428 = vst [vmem:[%s421 + $0x30] sm:$0xff] %v351
    %429 = vst [vmem:[%s421 + $0x38] sm:$0xff] %v353
    %s430 = scalar_lea.vmem [#allocation4], 256
    %431 = vst [vmem:[%s430] sm:$0xff] %v244
    %432 = vst [vmem:[%s430 + $0x8] sm:$0xff] %v246
    %433 = vst [vmem:[%s430 + $0x10] sm:$0xff] %v357
    %434 = vst [vmem:[%s430 + $0x18] sm:$0xff] %v359
    %435 = vst [vmem:[%s430 + $0x20] sm:$0xff] %v248
    %436 = vst [vmem:[%s430 + $0x28] sm:$0xff] %v250
    %437 = vst [vmem:[%s430 + $0x30] sm:$0xff] %v361
    %438 = vst [vmem:[%s430 + $0x38] sm:$0xff] %v363
    %s439 = scalar_lea.vmem [#allocation4], 320
    %440 = vst [vmem:[%s439] sm:$0xff] %v254
    %441 = vst [vmem:[%s439 + $0x8] sm:$0xff] %v256
    %442 = vst [vmem:[%s439 + $0x10] sm:$0xff] %v367
    %443 = vst [vmem:[%s439 + $0x18] sm:$0xff] %v369
    %444 = vst [vmem:[%s439 + $0x20] sm:$0xff] %v258
    %445 = vst [vmem:[%s439 + $0x28] sm:$0xff] %v260
    %446 = vst [vmem:[%s439 + $0x30] sm:$0xff] %v371
    %447 = vst [vmem:[%s439 + $0x38] sm:$0xff] %v373
    %s448 = scalar_lea.vmem [#allocation4], 384
    %449 = vst [vmem:[%s448] sm:$0xff] %v264
    %450 = vst [vmem:[%s448 + $0x8] sm:$0xff] %v266
    %451 = vst [vmem:[%s448 + $0x10] sm:$0xff] %v377
    %452 = vst [vmem:[%s448 + $0x18] sm:$0xff] %v379
    %453 = vst [vmem:[%s448 + $0x20] sm:$0xff] %v268
    %454 = vst [vmem:[%s448 + $0x28] sm:$0xff] %v270
    %455 = vst [vmem:[%s448 + $0x30] sm:$0xff] %v381
    %456 = vst [vmem:[%s448 + $0x38] sm:$0xff] %v383
    %s457 = scalar_lea.vmem [#allocation4], 448
    %458 = vst [vmem:[%s457] sm:$0xff] %v274
    %459 = vst [vmem:[%s457 + $0x8] sm:$0xff] %v276
    %460 = vst [vmem:[%s457 + $0x10] sm:$0xff] %v387
    %461 = vst [vmem:[%s457 + $0x18] sm:$0xff] %v389
    %462 = vst [vmem:[%s457 + $0x20] sm:$0xff] %v278
    %463 = vst [vmem:[%s457 + $0x28] sm:$0xff] %v280
    %464 = vst [vmem:[%s457 + $0x30] sm:$0xff] %v391
    %465 = vst [vmem:[%s457 + $0x38] sm:$0xff] %v393
    %v466 = vld [vmem:[#allocation5] sm:$0xff]
    %v467 = vld [vmem:[#allocation5 + $0x8] sm:$0xff]
    %v468 = vld [vmem:[#allocation5 + $0x10] sm:$0xff]
    %v469 = vld [vmem:[#allocation5 + $0x18] sm:$0xff]
    %v470 = vld [vmem:[#allocation5 + $0x20] sm:$0xff]
    %v471 = vld [vmem:[#allocation5 + $0x28] sm:$0xff]
    %v472 = vld [vmem:[#allocation5 + $0x30] sm:$0xff]
    %v473 = vld [vmem:[#allocation5 + $0x38] sm:$0xff]
    %v474 = vld [vmem:[#allocation5 + $0x40] sm:$0xff]
    %v475 = vld [vmem:[#allocation5 + $0x48] sm:$0xff]
    %v476 = vld [vmem:[#allocation5 + $0x50] sm:$0xff]
    %v477 = vld [vmem:[#allocation5 + $0x58] sm:$0xff]
    %v478 = vld [vmem:[#allocation5 + $0x60] sm:$0xff]
    %v479 = vld [vmem:[#allocation5 + $0x68] sm:$0xff]
    %v480 = vld [vmem:[#allocation5 + $0x70] sm:$0xff]
    %v481 = vld [vmem:[#allocation5 + $0x78] sm:$0xff]
    %v482 = vld [vmem:[#allocation5 + $0x80] sm:$0xff]
    %v483 = vld [vmem:[#allocation5 + $0x88] sm:$0xff]
    %v484 = vld [vmem:[#allocation5 + $0x90] sm:$0xff]
    %v485 = vld [vmem:[#allocation5 + $0x98] sm:$0xff]
    %v486 = vld [vmem:[#allocation5 + $0xa0] sm:$0xff]
    %v487 = vld [vmem:[#allocation5 + $0xa8] sm:$0xff]
    %v488 = vld [vmem:[#allocation5 + $0xb0] sm:$0xff]
    %v489 = vld [vmem:[#allocation5 + $0xb8] sm:$0xff]
    %v490 = vld [vmem:[#allocation5 + $0xc0] sm:$0xff]
    %v491 = vld [vmem:[#allocation5 + $0xc8] sm:$0xff]
    %v492 = vld [vmem:[#allocation5 + $0xd0] sm:$0xff]
    %v493 = vld [vmem:[#allocation5 + $0xd8] sm:$0xff]
    %v494 = vld [vmem:[#allocation5 + $0xe0] sm:$0xff]
    %v495 = vld [vmem:[#allocation5 + $0xe8] sm:$0xff]
    %v496 = vld [vmem:[#allocation5 + $0xf0] sm:$0xff]
    %v497 = vld [vmem:[#allocation5 + $0xf8] sm:$0xff]
    %v498 = vld [vmem:[#allocation2] sm:$0xf]
    %v499 = vld [vmem:[#allocation2 + $0x4] sm:$0xf]
    %v500 = vld [vmem:[#allocation3] sm:$0xff]
    %v501 = vld [vmem:[#allocation3 + $0x8] sm:$0xff]
    %v502 = vld [vmem:[#allocation4] sm:$0xff]
    %v503 = vld [vmem:[#allocation4 + $0x8] sm:$0xff]
    %v504 = vld [vmem:[#allocation4 + $0x10] sm:$0xff]
    %v505 = vld [vmem:[#allocation4 + $0x18] sm:$0xff]
    %v506 = vld [vmem:[#allocation4 + $0x20] sm:$0xff]
    %v507 = vld [vmem:[#allocation4 + $0x28] sm:$0xff]
    %v508 = vld [vmem:[#allocation4 + $0x30] sm:$0xff]
    %v509 = vld [vmem:[#allocation4 + $0x38] sm:$0xff]
    %v512 = vunpack.c.l.b16 %v498
    %v513 = vunpack.c.l.b16 %v499
    %v514 = vpack.c.b16 %v513, %v512
    %v548 = vunpack.c.l.b16 %v466
    %v549 = vunpack.c.h.b16 %v466
    %v550 = vunpack.c.l.b16 %v467
    %v551 = vunpack.c.h.b16 %v467
    %v552 = vunpack.c.l.b16 %v468
    %v553 = vunpack.c.h.b16 %v468
    %v554 = vunpack.c.l.b16 %v469
    %v555 = vunpack.c.h.b16 %v469
    %v556 = vunpack.c.l.b16 %v470
    %v557 = vunpack.c.h.b16 %v470
    %v558 = vunpack.c.l.b16 %v471
    %v559 = vunpack.c.h.b16 %v471
    %v560 = vunpack.c.l.b16 %v472
    %v561 = vunpack.c.h.b16 %v472
    %v562 = vunpack.c.l.b16 %v473
    %v563 = vunpack.c.h.b16 %v473
    %v564 = vunpack.c.l.b16 %v474
    %v565 = vunpack.c.h.b16 %v474
    %v566 = vunpack.c.l.b16 %v475
    %v567 = vunpack.c.h.b16 %v475
    %v568 = vunpack.c.l.b16 %v476
    %v569 = vunpack.c.h.b16 %v476
    %v570 = vunpack.c.l.b16 %v477
    %v571 = vunpack.c.h.b16 %v477
    %v572 = vunpack.c.l.b16 %v478
    %v573 = vunpack.c.h.b16 %v478
    %v574 = vunpack.c.l.b16 %v479
    %v575 = vunpack.c.h.b16 %v479
    %v576 = vunpack.c.l.b16 %v480
    %v577 = vunpack.c.h.b16 %v480
    %v578 = vunpack.c.l.b16 %v481
    %v579 = vunpack.c.h.b16 %v481
    %v580 = vunpack.c.l.b16 %v482
    %v581 = vunpack.c.h.b16 %v482
    %v582 = vunpack.c.l.b16 %v483
    %v583 = vunpack.c.h.b16 %v483
    %v584 = vunpack.c.l.b16 %v484
    %v585 = vunpack.c.h.b16 %v484
    %v586 = vunpack.c.l.b16 %v485
    %v587 = vunpack.c.h.b16 %v485
    %v588 = vunpack.c.l.b16 %v486
    %v589 = vunpack.c.h.b16 %v486
    %v590 = vunpack.c.l.b16 %v487
    %v591 = vunpack.c.h.b16 %v487
    %v592 = vunpack.c.l.b16 %v488
    %v593 = vunpack.c.h.b16 %v488
    %v594 = vunpack.c.l.b16 %v489
    %v595 = vunpack.c.h.b16 %v489
    %v596 = vunpack.c.l.b16 %v490
    %v597 = vunpack.c.h.b16 %v490
    %v598 = vunpack.c.l.b16 %v491
    %v599 = vunpack.c.h.b16 %v491
    %v600 = vunpack.c.l.b16 %v492
    %v601 = vunpack.c.h.b16 %v492
    %v602 = vunpack.c.l.b16 %v493
    %v603 = vunpack.c.h.b16 %v493
    %v604 = vunpack.c.l.b16 %v494
    %v605 = vunpack.c.h.b16 %v494
    %v606 = vunpack.c.l.b16 %v495
    %v607 = vunpack.c.h.b16 %v495
    %v608 = vunpack.c.l.b16 %v496
    %v609 = vunpack.c.h.b16 %v496
    %v610 = vunpack.c.l.b16 %v497
    %v611 = vunpack.c.h.b16 %v497
    %v612 = vpack.c.b16 %v552, %v548
    %v613 = vpack.c.b16 %v553, %v549
    %v614 = vpack.c.b16 %v554, %v550
    %v615 = vpack.c.b16 %v555, %v551
    %v616 = vpack.c.b16 %v560, %v556
    %v617 = vpack.c.b16 %v561, %v557
    %v618 = vpack.c.b16 %v562, %v558
    %v619 = vpack.c.b16 %v563, %v559
    %v620 = vpack.c.b16 %v568, %v564
    %v621 = vpack.c.b16 %v569, %v565
    %v622 = vpack.c.b16 %v570, %v566
    %v623 = vpack.c.b16 %v571, %v567
    %v624 = vpack.c.b16 %v576, %v572
    %v625 = vpack.c.b16 %v577, %v573
    %v626 = vpack.c.b16 %v578, %v574
    %v627 = vpack.c.b16 %v579, %v575
    %v628 = vpack.c.b16 %v584, %v580
    %v629 = vpack.c.b16 %v585, %v581
    %v630 = vpack.c.b16 %v586, %v582
    %v631 = vpack.c.b16 %v587, %v583
    %v632 = vpack.c.b16 %v592, %v588
    %v633 = vpack.c.b16 %v593, %v589
    %v634 = vpack.c.b16 %v594, %v590
    %v635 = vpack.c.b16 %v595, %v591
    %v636 = vpack.c.b16 %v600, %v596
    %v637 = vpack.c.b16 %v601, %v597
    %v638 = vpack.c.b16 %v602, %v598
    %v639 = vpack.c.b16 %v603, %v599
    %v640 = vpack.c.b16 %v608, %v604
    %v641 = vpack.c.b16 %v609, %v605
    %v642 = vpack.c.b16 %v610, %v606
    %v643 = vpack.c.b16 %v611, %v607
    %676 = vmatprep.subr.bf16.mxu0 %v641
    %677 = vmatpush1.bf16.msra.mxu0 %v640
    %678 = vmatprep.subr.bf16.mxu0 %v637
    %679 = vmatpush1.bf16.msra.mxu0 %v636
    %680 = vmatprep.subr.bf16.mxu0 %v633
    %681 = vmatpush1.bf16.msra.mxu0 %v632
    %682 = vmatprep.subr.bf16.mxu0 %v629
    %683 = vmatpush1.bf16.msra.mxu0 %v628
    %684 = vmatprep.subr.bf16.mxu0 %v625
    %685 = vmatpush1.bf16.msra.mxu0 %v624
    %686 = vmatprep.subr.bf16.mxu0 %v621
    %687 = vmatpush1.bf16.msra.mxu0 %v620
    %688 = vmatprep.subr.bf16.mxu0 %v617
    %689 = vmatpush1.bf16.msra.mxu0 %v616
    %690 = vmatprep.subr.bf16.mxu0 %v613
    %691 = vmatpush1.bf16.msra.mxu0 %v612
    %692 = vmatprep.subr.bf16.mxu0 0
    %693 = vmatpush2.bf16.msra.mxu0 0
    %694 = vmatprep.subr.bf16.mxu0 0
    %695 = vmatpush2.bf16.msra.mxu0 0
    %696 = vmatprep.subr.bf16.mxu0 0
    %697 = vmatpush2.bf16.msra.mxu0 0
    %698 = vmatprep.subr.bf16.mxu0 0
    %699 = vmatpush2.bf16.msra.mxu0 0
    %700 = vmatprep.subr.bf16.mxu0 0
    %701 = vmatpush2.bf16.msra.mxu0 0
    %702 = vmatprep.subr.bf16.mxu0 0
    %703 = vmatpush2.bf16.msra.mxu0 0
    %704 = vmatprep.subr.bf16.mxu0 0
    %705 = vmatpush2.bf16.msra.mxu0 0
    %706 = vmatprep.subr.bf16.mxu0 0
    %707 = vmatpush2.bf16.msra.mxu0 0
    %708 = vmatprep.mubr.bf16.mxu0 0
    %709 = vmatmul.mubr.bf16.gmra.mxu0 %v514
    %v710 = vpop.f32.mrf.mxu0
    %v711 = vadd.f32 0.0, %v710
    %v712 = vpop.f32.mrf.mxu0
    %v713 = vadd.f32 0.0, %v712
    %v714 = vpop.f32.mrf.mxu0
    %v715 = vadd.f32 0.0, %v714
    %v716 = vpop.f32.mrf.mxu0
    %v717 = vadd.f32 0.0, %v716
    %718 = vdwg.mxu0
    %719 = vmatprep.subr.bf16.mxu0 %v643
    %720 = vmatpush1.bf16.msra.mxu0 %v642
    %721 = vmatprep.subr.bf16.mxu0 %v639
    %722 = vmatpush1.bf16.msra.mxu0 %v638
    %723 = vmatprep.subr.bf16.mxu0 %v635
    %724 = vmatpush1.bf16.msra.mxu0 %v634
    %725 = vmatprep.subr.bf16.mxu0 %v631
    %726 = vmatpush1.bf16.msra.mxu0 %v630
    %727 = vmatprep.subr.bf16.mxu0 %v627
    %728 = vmatpush1.bf16.msra.mxu0 %v626
    %729 = vmatprep.subr.bf16.mxu0 %v623
    %730 = vmatpush1.bf16.msra.mxu0 %v622
    %731 = vmatprep.subr.bf16.mxu0 %v619
    %732 = vmatpush1.bf16.msra.mxu0 %v618
    %733 = vmatprep.subr.bf16.mxu0 %v615
    %734 = vmatpush1.bf16.msra.mxu0 %v614
    %735 = vmatprep.subr.bf16.mxu0 0
    %736 = vmatpush2.bf16.msra.mxu0 0
    %737 = vmatprep.subr.bf16.mxu0 0
    %738 = vmatpush2.bf16.msra.mxu0 0
    %739 = vmatprep.subr.bf16.mxu0 0
    %740 = vmatpush2.bf16.msra.mxu0 0
    %741 = vmatprep.subr.bf16.mxu0 0
    %742 = vmatpush2.bf16.msra.mxu0 0
    %743 = vmatprep.subr.bf16.mxu0 0
    %744 = vmatpush2.bf16.msra.mxu0 0
    %745 = vmatprep.subr.bf16.mxu0 0
    %746 = vmatpush2.bf16.msra.mxu0 0
    %747 = vmatprep.subr.bf16.mxu0 0
    %748 = vmatpush2.bf16.msra.mxu0 0
    %749 = vmatprep.subr.bf16.mxu0 0
    %750 = vmatpush2.bf16.msra.mxu0 0
    %751 = vmatprep.mubr.bf16.mxu0 0
    %752 = vmatmul.mubr.bf16.gmra.mxu0 %v514
    %v753 = vpop.f32.mrf.mxu0
    %v754 = vadd.f32 0.0, %v753
    %v755 = vpop.f32.mrf.mxu0
    %v756 = vadd.f32 0.0, %v755
    %v757 = vpop.f32.mrf.mxu0
    %v758 = vadd.f32 0.0, %v757
    %v759 = vpop.f32.mrf.mxu0
    %v760 = vadd.f32 0.0, %v759
    %761 = vdwg.mxu0
    %v762 = vadd.f32 %v502, %v711
    %v763 = vadd.f32 %v503, %v713
    %v764 = vadd.f32 %v504, %v754
    %v765 = vadd.f32 %v505, %v756
    %v766 = vadd.f32 %v506, %v715
    %v767 = vadd.f32 %v507, %v717
    %v768 = vadd.f32 %v508, %v758
    %v769 = vadd.f32 %v509, %v760
    %vm770 = vcmp.gt.f32.partialorder %v762, 0.5
    %vm771 = vcmp.gt.f32.partialorder %v766, 0.5
    %vm772 = vcmp.gt.f32.partialorder %v763, 0.5
    %vm773 = vcmp.gt.f32.partialorder %v767, 0.5
    %vm774 = vcmp.gt.f32.partialorder %v764, 0.5
    %vm775 = vcmp.gt.f32.partialorder %v768, 0.5
    %vm776 = vcmp.gt.f32.partialorder %v765, 0.5
    %vm777 = vcmp.gt.f32.partialorder %v769, 0.5
    %v778 = vmul.f32 %v500, 0.3
    %v779 = vmul.f32 %v501, 0.3
    %v780 = vsel %vm772, %v778, 0.0
    %v781 = vsel %vm773, %v779, 0.0
    %vm782 = vmand %vm770, %vm774
    %vm783 = vmand %vm771, %vm775
    %v784 = vsel %vm782, 1, 0
    %v785 = vsel %vm783, 1, 0
    %v786 = vcvt.s32.f32 %v784
    %v787 = vcvt.s32.f32 %v785
    %v788 = vadd.f32 %v780, %v786
    %v789 = vadd.f32 %v781, %v787
    %vm790 = vcmp.gt.f32.partialorder %v788, 0.5
    %vm791 = vcmp.gt.f32.partialorder %v789, 0.5
    %vm792 = vmand %vm776, %vm790
    %vm793 = vmand %vm777, %vm791
    %v794 = vsel %vm792, 1, 0
    %v795 = vsel %vm793, 1, 0
    %v796 = vcvt.s32.f32 %v794
    %v797 = vcvt.s32.f32 %v795
    %v798 = vpack.c.bf16 %v797, %v796
    %v800 = vunpack.c.l.b16 %v798
    %v801 = vunpack.c.h.b16 %v798
    %v802 = vpack.c.b16 %v800, %v800
    %v803 = vpack.c.b16 %v801, %v801
    %806 = vst [vmem:[#allocation8] sm:$0xf] %v802
    %807 = vst [vmem:[#allocation8 + $0x4] sm:$0xf] %v803
    %v808 = vld [vmem:[%s403] sm:$0xff]
    %v809 = vld [vmem:[%s403 + $0x8] sm:$0xff]
    %v810 = vld [vmem:[%s403 + $0x10] sm:$0xff]
    %v811 = vld [vmem:[%s403 + $0x18] sm:$0xff]
    %v812 = vld [vmem:[%s403 + $0x20] sm:$0xff]
    %v813 = vld [vmem:[%s403 + $0x28] sm:$0xff]
    %v814 = vld [vmem:[%s403 + $0x30] sm:$0xff]
    %v815 = vld [vmem:[%s403 + $0x38] sm:$0xff]
    %816 = vmatprep.subr.bf16.mxu0 %v641
    %817 = vmatpush1.bf16.msra.mxu0 %v640
    %818 = vmatprep.subr.bf16.mxu0 %v637
    %819 = vmatpush1.bf16.msra.mxu0 %v636
    %820 = vmatprep.subr.bf16.mxu0 %v633
    %821 = vmatpush1.bf16.msra.mxu0 %v632
    %822 = vmatprep.subr.bf16.mxu0 %v629
    %823 = vmatpush1.bf16.msra.mxu0 %v628
    %824 = vmatprep.subr.bf16.mxu0 %v625
    %825 = vmatpush1.bf16.msra.mxu0 %v624
    %826 = vmatprep.subr.bf16.mxu0 %v621
    %827 = vmatpush1.bf16.msra.mxu0 %v620
    %828 = vmatprep.subr.bf16.mxu0 %v617
    %829 = vmatpush1.bf16.msra.mxu0 %v616
    %830 = vmatprep.subr.bf16.mxu0 %v613
    %831 = vmatpush1.bf16.msra.mxu0 %v612
    %832 = vmatprep.subr.bf16.mxu0 0
    %833 = vmatpush2.bf16.msra.mxu0 0
    %834 = vmatprep.subr.bf16.mxu0 0
    %835 = vmatpush2.bf16.msra.mxu0 0
    %836 = vmatprep.subr.bf16.mxu0 0
    %837 = vmatpush2.bf16.msra.mxu0 0
    %838 = vmatprep.subr.bf16.mxu0 0
    %839 = vmatpush2.bf16.msra.mxu0 0
    %840 = vmatprep.subr.bf16.mxu0 0
    %841 = vmatpush2.bf16.msra.mxu0 0
    %842 = vmatprep.subr.bf16.mxu0 0
    %843 = vmatpush2.bf16.msra.mxu0 0
    %844 = vmatprep.subr.bf16.mxu0 0
    %845 = vmatpush2.bf16.msra.mxu0 0
    %846 = vmatprep.subr.bf16.mxu0 0
    %847 = vmatpush2.bf16.msra.mxu0 0
    %848 = vmatprep.mubr.bf16.mxu0 0
    %849 = vmatmul.mubr.bf16.gmra.mxu0 %v798
    %v850 = vpop.f32.mrf.mxu0
    %v851 = vadd.f32 0.0, %v850
    %v852 = vpop.f32.mrf.mxu0
    %v853 = vadd.f32 0.0, %v852
    %v854 = vpop.f32.mrf.mxu0
    %v855 = vadd.f32 0.0, %v854
    %v856 = vpop.f32.mrf.mxu0
    %v857 = vadd.f32 0.0, %v856
    %858 = vdwg.mxu0
    %859 = vmatprep.subr.bf16.mxu0 %v643
    %860 = vmatpush1.bf16.msra.mxu0 %v642
    %861 = vmatprep.subr.bf16.mxu0 %v639
    %862 = vmatpush1.bf16.msra.mxu0 %v638
    %863 = vmatprep.subr.bf16.mxu0 %v635
    %864 = vmatpush1.bf16.msra.mxu0 %v634
    %865 = vmatprep.subr.bf16.mxu0 %v631
    %866 = vmatpush1.bf16.msra.mxu0 %v630
    %867 = vmatprep.subr.bf16.mxu0 %v627
    %868 = vmatpush1.bf16.msra.mxu0 %v626
    %869 = vmatprep.subr.bf16.mxu0 %v623
    %870 = vmatpush1.bf16.msra.mxu0 %v622
    %871 = vmatprep.subr.bf16.mxu0 %v619
    %872 = vmatpush1.bf16.msra.mxu0 %v618
    %873 = vmatprep.subr.bf16.mxu0 %v615
    %874 = vmatpush1.bf16.msra.mxu0 %v614
    %875 = vmatprep.subr.bf16.mxu0 0
    %876 = vmatpush2.bf16.msra.mxu0 0
    %877 = vmatprep.subr.bf16.mxu0 0
    %878 = vmatpush2.bf16.msra.mxu0 0
    %879 = vmatprep.subr.bf16.mxu0 0
    %880 = vmatpush2.bf16.msra.mxu0 0
    %881 = vmatprep.subr.bf16.mxu0 0
    %882 = vmatpush2.bf16.msra.mxu0 0
    %883 = vmatprep.subr.bf16.mxu0 0
    %884 = vmatpush2.bf16.msra.mxu0 0
    %885 = vmatprep.subr.bf16.mxu0 0
    %886 = vmatpush2.bf16.msra.mxu0 0
    %887 = vmatprep.subr.bf16.mxu0 0
    %888 = vmatpush2.bf16.msra.mxu0 0
    %889 = vmatprep.subr.bf16.mxu0 0
    %890 = vmatpush2.bf16.msra.mxu0 0
    %891 = vmatprep.mubr.bf16.mxu0 0
    %892 = vmatmul.mubr.bf16.gmra.mxu0 %v798
    %v893 = vpop.f32.mrf.mxu0
    %v894 = vadd.f32 0.0, %v893
    %v895 = vpop.f32.mrf.mxu0
    %v896 = vadd.f32 0.0, %v895
    %v897 = vpop.f32.mrf.mxu0
    %v898 = vadd.f32 0.0, %v897
    %v899 = vpop.f32.mrf.mxu0
    %v900 = vadd.f32 0.0, %v899
    %901 = vdwg.mxu0
    %v902 = vadd.f32 %v808, %v851
    %v903 = vadd.f32 %v809, %v853
    %v904 = vadd.f32 %v810, %v894
    %v905 = vadd.f32 %v811, %v896
    %v906 = vadd.f32 %v812, %v855
    %v907 = vadd.f32 %v813, %v857
    %v908 = vadd.f32 %v814, %v898
    %v909 = vadd.f32 %v815, %v900
    %vm910 = vcmp.gt.f32.partialorder %v902, 0.5
    %vm911 = vcmp.gt.f32.partialorder %v906, 0.5
    %vm912 = vcmp.gt.f32.partialorder %v903, 0.5
    %vm913 = vcmp.gt.f32.partialorder %v907, 0.5
    %vm914 = vcmp.gt.f32.partialorder %v904, 0.5
    %vm915 = vcmp.gt.f32.partialorder %v908, 0.5
    %vm916 = vcmp.gt.f32.partialorder %v905, 0.5
    %vm917 = vcmp.gt.f32.partialorder %v909, 0.5
    %v918 = vmul.f32 %v788, 0.3
    %v919 = vmul.f32 %v789, 0.3
    %v920 = vsel %vm912, %v918, 0.0
    %v921 = vsel %vm913, %v919, 0.0
    %vm922 = vmand %vm910, %vm914
    %vm923 = vmand %vm911, %vm915
    %v924 = vsel %vm922, 1, 0
    %v925 = vsel %vm923, 1, 0
    %v926 = vcvt.s32.f32 %v924
    %v927 = vcvt.s32.f32 %v925
    %v928 = vadd.f32 %v920, %v926
    %v929 = vadd.f32 %v921, %v927
    %vm930 = vcmp.gt.f32.partialorder %v928, 0.5
    %vm931 = vcmp.gt.f32.partialorder %v929, 0.5
    %vm932 = vmand %vm916, %vm930
    %vm933 = vmand %vm917, %vm931
    %v934 = vsel %vm932, 1, 0
    %v935 = vsel %vm933, 1, 0
    %v936 = vcvt.s32.f32 %v934
    %v937 = vcvt.s32.f32 %v935
    %v938 = vpack.c.bf16 %v937, %v936
    %v940 = vunpack.c.l.b16 %v938
    %v941 = vunpack.c.h.b16 %v938
    %v942 = vpack.c.b16 %v940, %v940
    %v943 = vpack.c.b16 %v941, %v941
    %s946 = scalar_lea.vmem [#allocation8], 8
    %947 = vst [vmem:[%s946] sm:$0xf] %v942
    %948 = vst [vmem:[%s946 + $0x4] sm:$0xf] %v943
    %v949 = vld [vmem:[%s412] sm:$0xff]
    %v950 = vld [vmem:[%s412 + $0x8] sm:$0xff]
    %v951 = vld [vmem:[%s412 + $0x10] sm:$0xff]
    %v952 = vld [vmem:[%s412 + $0x18] sm:$0xff]
    %v953 = vld [vmem:[%s412 + $0x20] sm:$0xff]
    %v954 = vld [vmem:[%s412 + $0x28] sm:$0xff]
    %v955 = vld [vmem:[%s412 + $0x30] sm:$0xff]
    %v956 = vld [vmem:[%s412 + $0x38] sm:$0xff]
    %957 = vmatprep.subr.bf16.mxu0 %v641
    %958 = vmatpush1.bf16.msra.mxu0 %v640
    %959 = vmatprep.subr.bf16.mxu0 %v637
    %960 = vmatpush1.bf16.msra.mxu0 %v636
    %961 = vmatprep.subr.bf16.mxu0 %v633
    %962 = vmatpush1.bf16.msra.mxu0 %v632
    %963 = vmatprep.subr.bf16.mxu0 %v629
    %964 = vmatpush1.bf16.msra.mxu0 %v628
    %965 = vmatprep.subr.bf16.mxu0 %v625
    %966 = vmatpush1.bf16.msra.mxu0 %v624
    %967 = vmatprep.subr.bf16.mxu0 %v621
    %968 = vmatpush1.bf16.msra.mxu0 %v620
    %969 = vmatprep.subr.bf16.mxu0 %v617
    %970 = vmatpush1.bf16.msra.mxu0 %v616
    %971 = vmatprep.subr.bf16.mxu0 %v613
    %972 = vmatpush1.bf16.msra.mxu0 %v612
    %973 = vmatprep.subr.bf16.mxu0 0
    %974 = vmatpush2.bf16.msra.mxu0 0
    %975 = vmatprep.subr.bf16.mxu0 0
    %976 = vmatpush2.bf16.msra.mxu0 0
    %977 = vmatprep.subr.bf16.mxu0 0
    %978 = vmatpush2.bf16.msra.mxu0 0
    %979 = vmatprep.subr.bf16.mxu0 0
    %980 = vmatpush2.bf16.msra.mxu0 0
    %981 = vmatprep.subr.bf16.mxu0 0
    %982 = vmatpush2.bf16.msra.mxu0 0
    %983 = vmatprep.subr.bf16.mxu0 0
    %984 = vmatpush2.bf16.msra.mxu0 0
    %985 = vmatprep.subr.bf16.mxu0 0
    %986 = vmatpush2.bf16.msra.mxu0 0
    %987 = vmatprep.subr.bf16.mxu0 0
    %988 = vmatpush2.bf16.msra.mxu0 0
    %989 = vmatprep.mubr.bf16.mxu0 0
    %990 = vmatmul.mubr.bf16.gmra.mxu0 %v938
    %v991 = vpop.f32.mrf.mxu0
    %v992 = vadd.f32 0.0, %v991
    %v993 = vpop.f32.mrf.mxu0
    %v994 = vadd.f32 0.0, %v993
    %v995 = vpop.f32.mrf.mxu0
    %v996 = vadd.f32 0.0, %v995
    %v997 = vpop.f32.mrf.mxu0
    %v998 = vadd.f32 0.0, %v997
    %999 = vdwg.mxu0
    %1000 = vmatprep.subr.bf16.mxu0 %v643
    %1001 = vmatpush1.bf16.msra.mxu0 %v642
    %1002 = vmatprep.subr.bf16.mxu0 %v639
    %1003 = vmatpush1.bf16.msra.mxu0 %v638
    %1004 = vmatprep.subr.bf16.mxu0 %v635
    %1005 = vmatpush1.bf16.msra.mxu0 %v634
    %1006 = vmatprep.subr.bf16.mxu0 %v631
    %1007 = vmatpush1.bf16.msra.mxu0 %v630
    %1008 = vmatprep.subr.bf16.mxu0 %v627
    %1009 = vmatpush1.bf16.msra.mxu0 %v626
    %1010 = vmatprep.subr.bf16.mxu0 %v623
    %1011 = vmatpush1.bf16.msra.mxu0 %v622
    %1012 = vmatprep.subr.bf16.mxu0 %v619
    %1013 = vmatpush1.bf16.msra.mxu0 %v618
    %1014 = vmatprep.subr.bf16.mxu0 %v615
    %1015 = vmatpush1.bf16.msra.mxu0 %v614
    %1016 = vmatprep.subr.bf16.mxu0 0
    %1017 = vmatpush2.bf16.msra.mxu0 0
    %1018 = vmatprep.subr.bf16.mxu0 0
    %1019 = vmatpush2.bf16.msra.mxu0 0
    %1020 = vmatprep.subr.bf16.mxu0 0
    %1021 = vmatpush2.bf16.msra.mxu0 0
    %1022 = vmatprep.subr.bf16.mxu0 0
    %1023 = vmatpush2.bf16.msra.mxu0 0
    %1024 = vmatprep.subr.bf16.mxu0 0
    %1025 = vmatpush2.bf16.msra.mxu0 0
    %1026 = vmatprep.subr.bf16.mxu0 0
    %1027 = vmatpush2.bf16.msra.mxu0 0
    %1028 = vmatprep.subr.bf16.mxu0 0
    %1029 = vmatpush2.bf16.msra.mxu0 0
    %1030 = vmatprep.subr.bf16.mxu0 0
    %1031 = vmatpush2.bf16.msra.mxu0 0
    %1032 = vmatprep.mubr.bf16.mxu0 0
    %1033 = vmatmul.mubr.bf16.gmra.mxu0 %v938
    %v1034 = vpop.f32.mrf.mxu0
    %v1035 = vadd.f32 0.0, %v1034
    %v1036 = vpop.f32.mrf.mxu0
    %v1037 = vadd.f32 0.0, %v1036
    %v1038 = vpop.f32.mrf.mxu0
    %v1039 = vadd.f32 0.0, %v1038
    %v1040 = vpop.f32.mrf.mxu0
    %v1041 = vadd.f32 0.0, %v1040
    %1042 = vdwg.mxu0
    %v1043 = vadd.f32 %v949, %v992
    %v1044 = vadd.f32 %v950, %v994
    %v1045 = vadd.f32 %v951, %v1035
    %v1046 = vadd.f32 %v952, %v1037
    %v1047 = vadd.f32 %v953, %v996
    %v1048 = vadd.f32 %v954, %v998
    %v1049 = vadd.f32 %v955, %v1039
    %v1050 = vadd.f32 %v956, %v1041
    %vm1051 = vcmp.gt.f32.partialorder %v1043, 0.5
    %vm1052 = vcmp.gt.f32.partialorder %v1047, 0.5
    %vm1053 = vcmp.gt.f32.partialorder %v1044, 0.5
    %vm1054 = vcmp.gt.f32.partialorder %v1048, 0.5
    %vm1055 = vcmp.gt.f32.partialorder %v1045, 0.5
    %vm1056 = vcmp.gt.f32.partialorder %v1049, 0.5
    %vm1057 = vcmp.gt.f32.partialorder %v1046, 0.5
    %vm1058 = vcmp.gt.f32.partialorder %v1050, 0.5
    %v1059 = vmul.f32 %v928, 0.3
    %v1060 = vmul.f32 %v929, 0.3
    %v1061 = vsel %vm1053, %v1059, 0.0
    %v1062 = vsel %vm1054, %v1060, 0.0
    %vm1063 = vmand %vm1051, %vm1055
    %vm1064 = vmand %vm1052, %vm1056
    %v1065 = vsel %vm1063, 1, 0
    %v1066 = vsel %vm1064, 1, 0
    %v1067 = vcvt.s32.f32 %v1065
    %v1068 = vcvt.s32.f32 %v1066
    %v1069 = vadd.f32 %v1061, %v1067
    %v1070 = vadd.f32 %v1062, %v1068
    %vm1071 = vcmp.gt.f32.partialorder %v1069, 0.5
    %vm1072 = vcmp.gt.f32.partialorder %v1070, 0.5
    %vm1073 = vmand %vm1057, %vm1071
    %vm1074 = vmand %vm1058, %vm1072
    %v1075 = vsel %vm1073, 1, 0
    %v1076 = vsel %vm1074, 1, 0
    %v1077 = vcvt.s32.f32 %v1075
    %v1078 = vcvt.s32.f32 %v1076
    %v1079 = vpack.c.bf16 %v1078, %v1077
    %v1081 = vunpack.c.l.b16 %v1079
    %v1082 = vunpack.c.h.b16 %v1079
    %v1083 = vpack.c.b16 %v1081, %v1081
    %v1084 = vpack.c.b16 %v1082, %v1082
    %s1087 = scalar_lea.vmem [#allocation8], 16
    %1088 = vst [vmem:[%s1087] sm:$0xf] %v1083
    %1089 = vst [vmem:[%s1087 + $0x4] sm:$0xf] %v1084
    %v1090 = vld [vmem:[%s421] sm:$0xff]
    %v1091 = vld [vmem:[%s421 + $0x8] sm:$0xff]
    %v1092 = vld [vmem:[%s421 + $0x10] sm:$0xff]
    %v1093 = vld [vmem:[%s421 + $0x18] sm:$0xff]
    %v1094 = vld [vmem:[%s421 + $0x20] sm:$0xff]
    %v1095 = vld [vmem:[%s421 + $0x28] sm:$0xff]
    %v1096 = vld [vmem:[%s421 + $0x30] sm:$0xff]
    %v1097 = vld [vmem:[%s421 + $0x38] sm:$0xff]
    %1098 = vmatprep.subr.bf16.mxu0 %v641
    %1099 = vmatpush1.bf16.msra.mxu0 %v640
    %1100 = vmatprep.subr.bf16.mxu0 %v637
    %1101 = vmatpush1.bf16.msra.mxu0 %v636
    %1102 = vmatprep.subr.bf16.mxu0 %v633
    %1103 = vmatpush1.bf16.msra.mxu0 %v632
    %1104 = vmatprep.subr.bf16.mxu0 %v629
    %1105 = vmatpush1.bf16.msra.mxu0 %v628
    %1106 = vmatprep.subr.bf16.mxu0 %v625
    %1107 = vmatpush1.bf16.msra.mxu0 %v624
    %1108 = vmatprep.subr.bf16.mxu0 %v621
    %1109 = vmatpush1.bf16.msra.mxu0 %v620
    %1110 = vmatprep.subr.bf16.mxu0 %v617
    %1111 = vmatpush1.bf16.msra.mxu0 %v616
    %1112 = vmatprep.subr.bf16.mxu0 %v613
    %1113 = vmatpush1.bf16.msra.mxu0 %v612
    %1114 = vmatprep.subr.bf16.mxu0 0
    %1115 = vmatpush2.bf16.msra.mxu0 0
    %1116 = vmatprep.subr.bf16.mxu0 0
    %1117 = vmatpush2.bf16.msra.mxu0 0
    %1118 = vmatprep.subr.bf16.mxu0 0
    %1119 = vmatpush2.bf16.msra.mxu0 0
    %1120 = vmatprep.subr.bf16.mxu0 0
    %1121 = vmatpush2.bf16.msra.mxu0 0
    %1122 = vmatprep.subr.bf16.mxu0 0
    %1123 = vmatpush2.bf16.msra.mxu0 0
    %1124 = vmatprep.subr.bf16.mxu0 0
    %1125 = vmatpush2.bf16.msra.mxu0 0
    %1126 = vmatprep.subr.bf16.mxu0 0
    %1127 = vmatpush2.bf16.msra.mxu0 0
    %1128 = vmatprep.subr.bf16.mxu0 0
    %1129 = vmatpush2.bf16.msra.mxu0 0
    %1130 = vmatprep.mubr.bf16.mxu0 0
    %1131 = vmatmul.mubr.bf16.gmra.mxu0 %v1079
    %v1132 = vpop.f32.mrf.mxu0
    %v1133 = vadd.f32 0.0, %v1132
    %v1134 = vpop.f32.mrf.mxu0
    %v1135 = vadd.f32 0.0, %v1134
    %v1136 = vpop.f32.mrf.mxu0
    %v1137 = vadd.f32 0.0, %v1136
    %v1138 = vpop.f32.mrf.mxu0
    %v1139 = vadd.f32 0.0, %v1138
    %1140 = vdwg.mxu0
    %1141 = vmatprep.subr.bf16.mxu0 %v643
    %1142 = vmatpush1.bf16.msra.mxu0 %v642
    %1143 = vmatprep.subr.bf16.mxu0 %v639
    %1144 = vmatpush1.bf16.msra.mxu0 %v638
    %1145 = vmatprep.subr.bf16.mxu0 %v635
    %1146 = vmatpush1.bf16.msra.mxu0 %v634
    %1147 = vmatprep.subr.bf16.mxu0 %v631
    %1148 = vmatpush1.bf16.msra.mxu0 %v630
    %1149 = vmatprep.subr.bf16.mxu0 %v627
    %1150 = vmatpush1.bf16.msra.mxu0 %v626
    %1151 = vmatprep.subr.bf16.mxu0 %v623
    %1152 = vmatpush1.bf16.msra.mxu0 %v622
    %1153 = vmatprep.subr.bf16.mxu0 %v619
    %1154 = vmatpush1.bf16.msra.mxu0 %v618
    %1155 = vmatprep.subr.bf16.mxu0 %v615
    %1156 = vmatpush1.bf16.msra.mxu0 %v614
    %1157 = vmatprep.subr.bf16.mxu0 0
    %1158 = vmatpush2.bf16.msra.mxu0 0
    %1159 = vmatprep.subr.bf16.mxu0 0
    %1160 = vmatpush2.bf16.msra.mxu0 0
    %1161 = vmatprep.subr.bf16.mxu0 0
    %1162 = vmatpush2.bf16.msra.mxu0 0
    %1163 = vmatprep.subr.bf16.mxu0 0
    %1164 = vmatpush2.bf16.msra.mxu0 0
    %1165 = vmatprep.subr.bf16.mxu0 0
    %1166 = vmatpush2.bf16.msra.mxu0 0
    %1167 = vmatprep.subr.bf16.mxu0 0
    %1168 = vmatpush2.bf16.msra.mxu0 0
    %1169 = vmatprep.subr.bf16.mxu0 0
    %1170 = vmatpush2.bf16.msra.mxu0 0
    %1171 = vmatprep.subr.bf16.mxu0 0
    %1172 = vmatpush2.bf16.msra.mxu0 0
    %1173 = vmatprep.mubr.bf16.mxu0 0
    %1174 = vmatmul.mubr.bf16.gmra.mxu0 %v1079
    %v1175 = vpop.f32.mrf.mxu0
    %v1176 = vadd.f32 0.0, %v1175
    %v1177 = vpop.f32.mrf.mxu0
    %v1178 = vadd.f32 0.0, %v1177
    %v1179 = vpop.f32.mrf.mxu0
    %v1180 = vadd.f32 0.0, %v1179
    %v1181 = vpop.f32.mrf.mxu0
    %v1182 = vadd.f32 0.0, %v1181
    %1183 = vdwg.mxu0
    %v1184 = vadd.f32 %v1090, %v1133
    %v1185 = vadd.f32 %v1091, %v1135
    %v1186 = vadd.f32 %v1092, %v1176
    %v1187 = vadd.f32 %v1093, %v1178
    %v1188 = vadd.f32 %v1094, %v1137
    %v1189 = vadd.f32 %v1095, %v1139
    %v1190 = vadd.f32 %v1096, %v1180
    %v1191 = vadd.f32 %v1097, %v1182
    %vm1192 = vcmp.gt.f32.partialorder %v1184, 0.5
    %vm1193 = vcmp.gt.f32.partialorder %v1188, 0.5
    %vm1194 = vcmp.gt.f32.partialorder %v1185, 0.5
    %vm1195 = vcmp.gt.f32.partialorder %v1189, 0.5
    %vm1196 = vcmp.gt.f32.partialorder %v1186, 0.5
    %vm1197 = vcmp.gt.f32.partialorder %v1190, 0.5
    %vm1198 = vcmp.gt.f32.partialorder %v1187, 0.5
    %vm1199 = vcmp.gt.f32.partialorder %v1191, 0.5
    %v1200 = vmul.f32 %v1069, 0.3
    %v1201 = vmul.f32 %v1070, 0.3
    %v1202 = vsel %vm1194, %v1200, 0.0
    %v1203 = vsel %vm1195, %v1201, 0.0
    %vm1204 = vmand %vm1192, %vm1196
    %vm1205 = vmand %vm1193, %vm1197
    %v1206 = vsel %vm1204, 1, 0
    %v1207 = vsel %vm1205, 1, 0
    %v1208 = vcvt.s32.f32 %v1206
    %v1209 = vcvt.s32.f32 %v1207
    %v1210 = vadd.f32 %v1202, %v1208
    %v1211 = vadd.f32 %v1203, %v1209
    %vm1212 = vcmp.gt.f32.partialorder %v1210, 0.5
    %vm1213 = vcmp.gt.f32.partialorder %v1211, 0.5
    %vm1214 = vmand %vm1198, %vm1212
    %vm1215 = vmand %vm1199, %vm1213
    %v1216 = vsel %vm1214, 1, 0
    %v1217 = vsel %vm1215, 1, 0
    %v1218 = vcvt.s32.f32 %v1216
    %v1219 = vcvt.s32.f32 %v1217
    %v1220 = vpack.c.bf16 %v1219, %v1218
    %v1222 = vunpack.c.l.b16 %v1220
    %v1223 = vunpack.c.h.b16 %v1220
    %v1224 = vpack.c.b16 %v1222, %v1222
    %v1225 = vpack.c.b16 %v1223, %v1223
    %s1228 = scalar_lea.vmem [#allocation8], 24
    %1229 = vst [vmem:[%s1228] sm:$0xf] %v1224
    %1230 = vst [vmem:[%s1228 + $0x4] sm:$0xf] %v1225
    %v1231 = vld [vmem:[%s430] sm:$0xff]
    %v1232 = vld [vmem:[%s430 + $0x8] sm:$0xff]
    %v1233 = vld [vmem:[%s430 + $0x10] sm:$0xff]
    %v1234 = vld [vmem:[%s430 + $0x18] sm:$0xff]
    %v1235 = vld [vmem:[%s430 + $0x20] sm:$0xff]
    %v1236 = vld [vmem:[%s430 + $0x28] sm:$0xff]
    %v1237 = vld [vmem:[%s430 + $0x30] sm:$0xff]
    %v1238 = vld [vmem:[%s430 + $0x38] sm:$0xff]
    %1239 = vmatprep.subr.bf16.mxu0 %v641
    %1240 = vmatpush1.bf16.msra.mxu0 %v640
    %1241 = vmatprep.subr.bf16.mxu0 %v637
    %1242 = vmatpush1.bf16.msra.mxu0 %v636
    %1243 = vmatprep.subr.bf16.mxu0 %v633
    %1244 = vmatpush1.bf16.msra.mxu0 %v632
    %1245 = vmatprep.subr.bf16.mxu0 %v629
    %1246 = vmatpush1.bf16.msra.mxu0 %v628
    %1247 = vmatprep.subr.bf16.mxu0 %v625
    %1248 = vmatpush1.bf16.msra.mxu0 %v624
    %1249 = vmatprep.subr.bf16.mxu0 %v621
    %1250 = vmatpush1.bf16.msra.mxu0 %v620
    %1251 = vmatprep.subr.bf16.mxu0 %v617
    %1252 = vmatpush1.bf16.msra.mxu0 %v616
    %1253 = vmatprep.subr.bf16.mxu0 %v613
    %1254 = vmatpush1.bf16.msra.mxu0 %v612
    %1255 = vmatprep.subr.bf16.mxu0 0
    %1256 = vmatpush2.bf16.msra.mxu0 0
    %1257 = vmatprep.subr.bf16.mxu0 0
    %1258 = vmatpush2.bf16.msra.mxu0 0
    %1259 = vmatprep.subr.bf16.mxu0 0
    %1260 = vmatpush2.bf16.msra.mxu0 0
    %1261 = vmatprep.subr.bf16.mxu0 0
    %1262 = vmatpush2.bf16.msra.mxu0 0
    %1263 = vmatprep.subr.bf16.mxu0 0
    %1264 = vmatpush2.bf16.msra.mxu0 0
    %1265 = vmatprep.subr.bf16.mxu0 0
    %1266 = vmatpush2.bf16.msra.mxu0 0
    %1267 = vmatprep.subr.bf16.mxu0 0
    %1268 = vmatpush2.bf16.msra.mxu0 0
    %1269 = vmatprep.subr.bf16.mxu0 0
    %1270 = vmatpush2.bf16.msra.mxu0 0
    %1271 = vmatprep.mubr.bf16.mxu0 0
    %1272 = vmatmul.mubr.bf16.gmra.mxu0 %v1220
    %v1273 = vpop.f32.mrf.mxu0
    %v1274 = vadd.f32 0.0, %v1273
    %v1275 = vpop.f32.mrf.mxu0
    %v1276 = vadd.f32 0.0, %v1275
    %v1277 = vpop.f32.mrf.mxu0
    %v1278 = vadd.f32 0.0, %v1277
    %v1279 = vpop.f32.mrf.mxu0
    %v1280 = vadd.f32 0.0, %v1279
    %1281 = vdwg.mxu0
    %1282 = vmatprep.subr.bf16.mxu0 %v643
    %1283 = vmatpush1.bf16.msra.mxu0 %v642
    %1284 = vmatprep.subr.bf16.mxu0 %v639
    %1285 = vmatpush1.bf16.msra.mxu0 %v638
    %1286 = vmatprep.subr.bf16.mxu0 %v635
    %1287 = vmatpush1.bf16.msra.mxu0 %v634
    %1288 = vmatprep.subr.bf16.mxu0 %v631
    %1289 = vmatpush1.bf16.msra.mxu0 %v630
    %1290 = vmatprep.subr.bf16.mxu0 %v627
    %1291 = vmatpush1.bf16.msra.mxu0 %v626
    %1292 = vmatprep.subr.bf16.mxu0 %v623
    %1293 = vmatpush1.bf16.msra.mxu0 %v622
    %1294 = vmatprep.subr.bf16.mxu0 %v619
    %1295 = vmatpush1.bf16.msra.mxu0 %v618
    %1296 = vmatprep.subr.bf16.mxu0 %v615
    %1297 = vmatpush1.bf16.msra.mxu0 %v614
    %1298 = vmatprep.subr.bf16.mxu0 0
    %1299 = vmatpush2.bf16.msra.mxu0 0
    %1300 = vmatprep.subr.bf16.mxu0 0
    %1301 = vmatpush2.bf16.msra.mxu0 0
    %1302 = vmatprep.subr.bf16.mxu0 0
    %1303 = vmatpush2.bf16.msra.mxu0 0
    %1304 = vmatprep.subr.bf16.mxu0 0
    %1305 = vmatpush2.bf16.msra.mxu0 0
    %1306 = vmatprep.subr.bf16.mxu0 0
    %1307 = vmatpush2.bf16.msra.mxu0 0
    %1308 = vmatprep.subr.bf16.mxu0 0
    %1309 = vmatpush2.bf16.msra.mxu0 0
    %1310 = vmatprep.subr.bf16.mxu0 0
    %1311 = vmatpush2.bf16.msra.mxu0 0
    %1312 = vmatprep.subr.bf16.mxu0 0
    %1313 = vmatpush2.bf16.msra.mxu0 0
    %1314 = vmatprep.mubr.bf16.mxu0 0
    %1315 = vmatmul.mubr.bf16.gmra.mxu0 %v1220
    %v1316 = vpop.f32.mrf.mxu0
    %v1317 = vadd.f32 0.0, %v1316
    %v1318 = vpop.f32.mrf.mxu0
    %v1319 = vadd.f32 0.0, %v1318
    %v1320 = vpop.f32.mrf.mxu0
    %v1321 = vadd.f32 0.0, %v1320
    %v1322 = vpop.f32.mrf.mxu0
    %v1323 = vadd.f32 0.0, %v1322
    %1324 = vdwg.mxu0
    %v1325 = vadd.f32 %v1231, %v1274
    %v1326 = vadd.f32 %v1232, %v1276
    %v1327 = vadd.f32 %v1233, %v1317
    %v1328 = vadd.f32 %v1234, %v1319
    %v1329 = vadd.f32 %v1235, %v1278
    %v1330 = vadd.f32 %v1236, %v1280
    %v1331 = vadd.f32 %v1237, %v1321
    %v1332 = vadd.f32 %v1238, %v1323
    %vm1333 = vcmp.gt.f32.partialorder %v1325, 0.5
    %vm1334 = vcmp.gt.f32.partialorder %v1329, 0.5
    %vm1335 = vcmp.gt.f32.partialorder %v1326, 0.5
    %vm1336 = vcmp.gt.f32.partialorder %v1330, 0.5
    %vm1337 = vcmp.gt.f32.partialorder %v1327, 0.5
    %vm1338 = vcmp.gt.f32.partialorder %v1331, 0.5
    %vm1339 = vcmp.gt.f32.partialorder %v1328, 0.5
    %vm1340 = vcmp.gt.f32.partialorder %v1332, 0.5
    %v1341 = vmul.f32 %v1210, 0.3
    %v1342 = vmul.f32 %v1211, 0.3
    %v1343 = vsel %vm1335, %v1341, 0.0
    %v1344 = vsel %vm1336, %v1342, 0.0
    %vm1345 = vmand %vm1333, %vm1337
    %vm1346 = vmand %vm1334, %vm1338
    %v1347 = vsel %vm1345, 1, 0
    %v1348 = vsel %vm1346, 1, 0
    %v1349 = vcvt.s32.f32 %v1347
    %v1350 = vcvt.s32.f32 %v1348
    %v1351 = vadd.f32 %v1343, %v1349
    %v1352 = vadd.f32 %v1344, %v1350
    %vm1353 = vcmp.gt.f32.partialorder %v1351, 0.5
    %vm1354 = vcmp.gt.f32.partialorder %v1352, 0.5
    %vm1355 = vmand %vm1339, %vm1353
    %vm1356 = vmand %vm1340, %vm1354
    %v1357 = vsel %vm1355, 1, 0
    %v1358 = vsel %vm1356, 1, 0
    %v1359 = vcvt.s32.f32 %v1357
    %v1360 = vcvt.s32.f32 %v1358
    %v1361 = vpack.c.bf16 %v1360, %v1359
    %v1363 = vunpack.c.l.b16 %v1361
    %v1364 = vunpack.c.h.b16 %v1361
    %v1365 = vpack.c.b16 %v1363, %v1363
    %v1366 = vpack.c.b16 %v1364, %v1364
    %s1369 = scalar_lea.vmem [#allocation8], 32
    %1370 = vst [vmem:[%s1369] sm:$0xf] %v1365
    %1371 = vst [vmem:[%s1369 + $0x4] sm:$0xf] %v1366
    %v1372 = vld [vmem:[%s439] sm:$0xff]
    %v1373 = vld [vmem:[%s439 + $0x8] sm:$0xff]
    %v1374 = vld [vmem:[%s439 + $0x10] sm:$0xff]
    %v1375 = vld [vmem:[%s439 + $0x18] sm:$0xff]
    %v1376 = vld [vmem:[%s439 + $0x20] sm:$0xff]
    %v1377 = vld [vmem:[%s439 + $0x28] sm:$0xff]
    %v1378 = vld [vmem:[%s439 + $0x30] sm:$0xff]
    %v1379 = vld [vmem:[%s439 + $0x38] sm:$0xff]
    %1380 = vmatprep.subr.bf16.mxu0 %v641
    %1381 = vmatpush1.bf16.msra.mxu0 %v640
    %1382 = vmatprep.subr.bf16.mxu0 %v637
    %1383 = vmatpush1.bf16.msra.mxu0 %v636
    %1384 = vmatprep.subr.bf16.mxu0 %v633
    %1385 = vmatpush1.bf16.msra.mxu0 %v632
    %1386 = vmatprep.subr.bf16.mxu0 %v629
    %1387 = vmatpush1.bf16.msra.mxu0 %v628
    %1388 = vmatprep.subr.bf16.mxu0 %v625
    %1389 = vmatpush1.bf16.msra.mxu0 %v624
    %1390 = vmatprep.subr.bf16.mxu0 %v621
    %1391 = vmatpush1.bf16.msra.mxu0 %v620
    %1392 = vmatprep.subr.bf16.mxu0 %v617
    %1393 = vmatpush1.bf16.msra.mxu0 %v616
    %1394 = vmatprep.subr.bf16.mxu0 %v613
    %1395 = vmatpush1.bf16.msra.mxu0 %v612
    %1396 = vmatprep.subr.bf16.mxu0 0
    %1397 = vmatpush2.bf16.msra.mxu0 0
    %1398 = vmatprep.subr.bf16.mxu0 0
    %1399 = vmatpush2.bf16.msra.mxu0 0
    %1400 = vmatprep.subr.bf16.mxu0 0
    %1401 = vmatpush2.bf16.msra.mxu0 0
    %1402 = vmatprep.subr.bf16.mxu0 0
    %1403 = vmatpush2.bf16.msra.mxu0 0
    %1404 = vmatprep.subr.bf16.mxu0 0
    %1405 = vmatpush2.bf16.msra.mxu0 0
    %1406 = vmatprep.subr.bf16.mxu0 0
    %1407 = vmatpush2.bf16.msra.mxu0 0
    %1408 = vmatprep.subr.bf16.mxu0 0
    %1409 = vmatpush2.bf16.msra.mxu0 0
    %1410 = vmatprep.subr.bf16.mxu0 0
    %1411 = vmatpush2.bf16.msra.mxu0 0
    %1412 = vmatprep.mubr.bf16.mxu0 0
    %1413 = vmatmul.mubr.bf16.gmra.mxu0 %v1361
    %v1414 = vpop.f32.mrf.mxu0
    %v1415 = vadd.f32 0.0, %v1414
    %v1416 = vpop.f32.mrf.mxu0
    %v1417 = vadd.f32 0.0, %v1416
    %v1418 = vpop.f32.mrf.mxu0
    %v1419 = vadd.f32 0.0, %v1418
    %v1420 = vpop.f32.mrf.mxu0
    %v1421 = vadd.f32 0.0, %v1420
    %1422 = vdwg.mxu0
    %1423 = vmatprep.subr.bf16.mxu0 %v643
    %1424 = vmatpush1.bf16.msra.mxu0 %v642
    %1425 = vmatprep.subr.bf16.mxu0 %v639
    %1426 = vmatpush1.bf16.msra.mxu0 %v638
    %1427 = vmatprep.subr.bf16.mxu0 %v635
    %1428 = vmatpush1.bf16.msra.mxu0 %v634
    %1429 = vmatprep.subr.bf16.mxu0 %v631
    %1430 = vmatpush1.bf16.msra.mxu0 %v630
    %1431 = vmatprep.subr.bf16.mxu0 %v627
    %1432 = vmatpush1.bf16.msra.mxu0 %v626
    %1433 = vmatprep.subr.bf16.mxu0 %v623
    %1434 = vmatpush1.bf16.msra.mxu0 %v622
    %1435 = vmatprep.subr.bf16.mxu0 %v619
    %1436 = vmatpush1.bf16.msra.mxu0 %v618
    %1437 = vmatprep.subr.bf16.mxu0 %v615
    %1438 = vmatpush1.bf16.msra.mxu0 %v614
    %1439 = vmatprep.subr.bf16.mxu0 0
    %1440 = vmatpush2.bf16.msra.mxu0 0
    %1441 = vmatprep.subr.bf16.mxu0 0
    %1442 = vmatpush2.bf16.msra.mxu0 0
    %1443 = vmatprep.subr.bf16.mxu0 0
    %1444 = vmatpush2.bf16.msra.mxu0 0
    %1445 = vmatprep.subr.bf16.mxu0 0
    %1446 = vmatpush2.bf16.msra.mxu0 0
    %1447 = vmatprep.subr.bf16.mxu0 0
    %1448 = vmatpush2.bf16.msra.mxu0 0
    %1449 = vmatprep.subr.bf16.mxu0 0
    %1450 = vmatpush2.bf16.msra.mxu0 0
    %1451 = vmatprep.subr.bf16.mxu0 0
    %1452 = vmatpush2.bf16.msra.mxu0 0
    %1453 = vmatprep.subr.bf16.mxu0 0
    %1454 = vmatpush2.bf16.msra.mxu0 0
    %1455 = vmatprep.mubr.bf16.mxu0 0
    %1456 = vmatmul.mubr.bf16.gmra.mxu0 %v1361
    %v1457 = vpop.f32.mrf.mxu0
    %v1458 = vadd.f32 0.0, %v1457
    %v1459 = vpop.f32.mrf.mxu0
    %v1460 = vadd.f32 0.0, %v1459
    %v1461 = vpop.f32.mrf.mxu0
    %v1462 = vadd.f32 0.0, %v1461
    %v1463 = vpop.f32.mrf.mxu0
    %v1464 = vadd.f32 0.0, %v1463
    %1465 = vdwg.mxu0
    %v1466 = vadd.f32 %v1372, %v1415
    %v1467 = vadd.f32 %v1373, %v1417
    %v1468 = vadd.f32 %v1374, %v1458
    %v1469 = vadd.f32 %v1375, %v1460
    %v1470 = vadd.f32 %v1376, %v1419
    %v1471 = vadd.f32 %v1377, %v1421
    %v1472 = vadd.f32 %v1378, %v1462
    %v1473 = vadd.f32 %v1379, %v1464
    %vm1474 = vcmp.gt.f32.partialorder %v1466, 0.5
    %vm1475 = vcmp.gt.f32.partialorder %v1470, 0.5
    %vm1476 = vcmp.gt.f32.partialorder %v1467, 0.5
    %vm1477 = vcmp.gt.f32.partialorder %v1471, 0.5
    %vm1478 = vcmp.gt.f32.partialorder %v1468, 0.5
    %vm1479 = vcmp.gt.f32.partialorder %v1472, 0.5
    %vm1480 = vcmp.gt.f32.partialorder %v1469, 0.5
    %vm1481 = vcmp.gt.f32.partialorder %v1473, 0.5
    %v1482 = vmul.f32 %v1351, 0.3
    %v1483 = vmul.f32 %v1352, 0.3
    %v1484 = vsel %vm1476, %v1482, 0.0
    %v1485 = vsel %vm1477, %v1483, 0.0
    %vm1486 = vmand %vm1474, %vm1478
    %vm1487 = vmand %vm1475, %vm1479
    %v1488 = vsel %vm1486, 1, 0
    %v1489 = vsel %vm1487, 1, 0
    %v1490 = vcvt.s32.f32 %v1488
    %v1491 = vcvt.s32.f32 %v1489
    %v1492 = vadd.f32 %v1484, %v1490
    %v1493 = vadd.f32 %v1485, %v1491
    %vm1494 = vcmp.gt.f32.partialorder %v1492, 0.5
    %vm1495 = vcmp.gt.f32.partialorder %v1493, 0.5
    %vm1496 = vmand %vm1480, %vm1494
    %vm1497 = vmand %vm1481, %vm1495
    %v1498 = vsel %vm1496, 1, 0
    %v1499 = vsel %vm1497, 1, 0
    %v1500 = vcvt.s32.f32 %v1498
    %v1501 = vcvt.s32.f32 %v1499
    %v1502 = vpack.c.bf16 %v1501, %v1500
    %v1504 = vunpack.c.l.b16 %v1502
    %v1505 = vunpack.c.h.b16 %v1502
    %v1506 = vpack.c.b16 %v1504, %v1504
    %v1507 = vpack.c.b16 %v1505, %v1505
    %s1510 = scalar_lea.vmem [#allocation8], 40
    %1511 = vst [vmem:[%s1510] sm:$0xf] %v1506
    %1512 = vst [vmem:[%s1510 + $0x4] sm:$0xf] %v1507
    %v1513 = vld [vmem:[%s448] sm:$0xff]
    %v1514 = vld [vmem:[%s448 + $0x8] sm:$0xff]
    %v1515 = vld [vmem:[%s448 + $0x10] sm:$0xff]
    %v1516 = vld [vmem:[%s448 + $0x18] sm:$0xff]
    %v1517 = vld [vmem:[%s448 + $0x20] sm:$0xff]
    %v1518 = vld [vmem:[%s448 + $0x28] sm:$0xff]
    %v1519 = vld [vmem:[%s448 + $0x30] sm:$0xff]
    %v1520 = vld [vmem:[%s448 + $0x38] sm:$0xff]
    %1521 = vmatprep.subr.bf16.mxu0 %v641
    %1522 = vmatpush1.bf16.msra.mxu0 %v640
    %1523 = vmatprep.subr.bf16.mxu0 %v637
    %1524 = vmatpush1.bf16.msra.mxu0 %v636
    %1525 = vmatprep.subr.bf16.mxu0 %v633
    %1526 = vmatpush1.bf16.msra.mxu0 %v632
    %1527 = vmatprep.subr.bf16.mxu0 %v629
    %1528 = vmatpush1.bf16.msra.mxu0 %v628
    %1529 = vmatprep.subr.bf16.mxu0 %v625
    %1530 = vmatpush1.bf16.msra.mxu0 %v624
    %1531 = vmatprep.subr.bf16.mxu0 %v621
    %1532 = vmatpush1.bf16.msra.mxu0 %v620
    %1533 = vmatprep.subr.bf16.mxu0 %v617
    %1534 = vmatpush1.bf16.msra.mxu0 %v616
    %1535 = vmatprep.subr.bf16.mxu0 %v613
    %1536 = vmatpush1.bf16.msra.mxu0 %v612
    %1537 = vmatprep.subr.bf16.mxu0 0
    %1538 = vmatpush2.bf16.msra.mxu0 0
    %1539 = vmatprep.subr.bf16.mxu0 0
    %1540 = vmatpush2.bf16.msra.mxu0 0
    %1541 = vmatprep.subr.bf16.mxu0 0
    %1542 = vmatpush2.bf16.msra.mxu0 0
    %1543 = vmatprep.subr.bf16.mxu0 0
    %1544 = vmatpush2.bf16.msra.mxu0 0
    %1545 = vmatprep.subr.bf16.mxu0 0
    %1546 = vmatpush2.bf16.msra.mxu0 0
    %1547 = vmatprep.subr.bf16.mxu0 0
    %1548 = vmatpush2.bf16.msra.mxu0 0
    %1549 = vmatprep.subr.bf16.mxu0 0
    %1550 = vmatpush2.bf16.msra.mxu0 0
    %1551 = vmatprep.subr.bf16.mxu0 0
    %1552 = vmatpush2.bf16.msra.mxu0 0
    %1553 = vmatprep.mubr.bf16.mxu0 0
    %1554 = vmatmul.mubr.bf16.gmra.mxu0 %v1502
    %v1555 = vpop.f32.mrf.mxu0
    %v1556 = vadd.f32 0.0, %v1555
    %v1557 = vpop.f32.mrf.mxu0
    %v1558 = vadd.f32 0.0, %v1557
    %v1559 = vpop.f32.mrf.mxu0
    %v1560 = vadd.f32 0.0, %v1559
    %v1561 = vpop.f32.mrf.mxu0
    %v1562 = vadd.f32 0.0, %v1561
    %1563 = vdwg.mxu0
    %1564 = vmatprep.subr.bf16.mxu0 %v643
    %1565 = vmatpush1.bf16.msra.mxu0 %v642
    %1566 = vmatprep.subr.bf16.mxu0 %v639
    %1567 = vmatpush1.bf16.msra.mxu0 %v638
    %1568 = vmatprep.subr.bf16.mxu0 %v635
    %1569 = vmatpush1.bf16.msra.mxu0 %v634
    %1570 = vmatprep.subr.bf16.mxu0 %v631
    %1571 = vmatpush1.bf16.msra.mxu0 %v630
    %1572 = vmatprep.subr.bf16.mxu0 %v627
    %1573 = vmatpush1.bf16.msra.mxu0 %v626
    %1574 = vmatprep.subr.bf16.mxu0 %v623
    %1575 = vmatpush1.bf16.msra.mxu0 %v622
    %1576 = vmatprep.subr.bf16.mxu0 %v619
    %1577 = vmatpush1.bf16.msra.mxu0 %v618
    %1578 = vmatprep.subr.bf16.mxu0 %v615
    %1579 = vmatpush1.bf16.msra.mxu0 %v614
    %1580 = vmatprep.subr.bf16.mxu0 0
    %1581 = vmatpush2.bf16.msra.mxu0 0
    %1582 = vmatprep.subr.bf16.mxu0 0
    %1583 = vmatpush2.bf16.msra.mxu0 0
    %1584 = vmatprep.subr.bf16.mxu0 0
    %1585 = vmatpush2.bf16.msra.mxu0 0
    %1586 = vmatprep.subr.bf16.mxu0 0
    %1587 = vmatpush2.bf16.msra.mxu0 0
    %1588 = vmatprep.subr.bf16.mxu0 0
    %1589 = vmatpush2.bf16.msra.mxu0 0
    %1590 = vmatprep.subr.bf16.mxu0 0
    %1591 = vmatpush2.bf16.msra.mxu0 0
    %1592 = vmatprep.subr.bf16.mxu0 0
    %1593 = vmatpush2.bf16.msra.mxu0 0
    %1594 = vmatprep.subr.bf16.mxu0 0
    %1595 = vmatpush2.bf16.msra.mxu0 0
    %1596 = vmatprep.mubr.bf16.mxu0 0
    %1597 = vmatmul.mubr.bf16.gmra.mxu0 %v1502
    %v1598 = vpop.f32.mrf.mxu0
    %v1599 = vadd.f32 0.0, %v1598
    %v1600 = vpop.f32.mrf.mxu0
    %v1601 = vadd.f32 0.0, %v1600
    %v1602 = vpop.f32.mrf.mxu0
    %v1603 = vadd.f32 0.0, %v1602
    %v1604 = vpop.f32.mrf.mxu0
    %v1605 = vadd.f32 0.0, %v1604
    %1606 = vdwg.mxu0
    %v1607 = vadd.f32 %v1513, %v1556
    %v1608 = vadd.f32 %v1514, %v1558
    %v1609 = vadd.f32 %v1515, %v1599
    %v1610 = vadd.f32 %v1516, %v1601
    %v1611 = vadd.f32 %v1517, %v1560
    %v1612 = vadd.f32 %v1518, %v1562
    %v1613 = vadd.f32 %v1519, %v1603
    %v1614 = vadd.f32 %v1520, %v1605
    %vm1615 = vcmp.gt.f32.partialorder %v1607, 0.5
    %vm1616 = vcmp.gt.f32.partialorder %v1611, 0.5
    %vm1617 = vcmp.gt.f32.partialorder %v1608, 0.5
    %vm1618 = vcmp.gt.f32.partialorder %v1612, 0.5
    %vm1619 = vcmp.gt.f32.partialorder %v1609, 0.5
    %vm1620 = vcmp.gt.f32.partialorder %v1613, 0.5
    %vm1621 = vcmp.gt.f32.partialorder %v1610, 0.5
    %vm1622 = vcmp.gt.f32.partialorder %v1614, 0.5
    %v1623 = vmul.f32 %v1492, 0.3
    %v1624 = vmul.f32 %v1493, 0.3
    %v1625 = vsel %vm1617, %v1623, 0.0
    %v1626 = vsel %vm1618, %v1624, 0.0
    %vm1627 = vmand %vm1615, %vm1619
    %vm1628 = vmand %vm1616, %vm1620
    %v1629 = vsel %vm1627, 1, 0
    %v1630 = vsel %vm1628, 1, 0
    %v1631 = vcvt.s32.f32 %v1629
    %v1632 = vcvt.s32.f32 %v1630
    %v1633 = vadd.f32 %v1625, %v1631
    %v1634 = vadd.f32 %v1626, %v1632
    %vm1635 = vcmp.gt.f32.partialorder %v1633, 0.5
    %vm1636 = vcmp.gt.f32.partialorder %v1634, 0.5
    %vm1637 = vmand %vm1621, %vm1635
    %vm1638 = vmand %vm1622, %vm1636
    %v1639 = vsel %vm1637, 1, 0
    %v1640 = vsel %vm1638, 1, 0
    %v1641 = vcvt.s32.f32 %v1639
    %v1642 = vcvt.s32.f32 %v1640
    %v1643 = vpack.c.bf16 %v1642, %v1641
    %v1645 = vunpack.c.l.b16 %v1643
    %v1646 = vunpack.c.h.b16 %v1643
    %v1647 = vpack.c.b16 %v1645, %v1645
    %v1648 = vpack.c.b16 %v1646, %v1646
    %s1651 = scalar_lea.vmem [#allocation8], 48
    %1652 = vst [vmem:[%s1651] sm:$0xf] %v1647
    %1653 = vst [vmem:[%s1651 + $0x4] sm:$0xf] %v1648
    %v1654 = vld [vmem:[%s457] sm:$0xff]
    %v1655 = vld [vmem:[%s457 + $0x8] sm:$0xff]
    %v1656 = vld [vmem:[%s457 + $0x10] sm:$0xff]
    %v1657 = vld [vmem:[%s457 + $0x18] sm:$0xff]
    %v1658 = vld [vmem:[%s457 + $0x20] sm:$0xff]
    %v1659 = vld [vmem:[%s457 + $0x28] sm:$0xff]
    %v1660 = vld [vmem:[%s457 + $0x30] sm:$0xff]
    %v1661 = vld [vmem:[%s457 + $0x38] sm:$0xff]
    %1662 = vmatprep.subr.bf16.mxu0 %v641
    %1663 = vmatpush1.bf16.msra.mxu0 %v640
    %1664 = vmatprep.subr.bf16.mxu0 %v637
    %1665 = vmatpush1.bf16.msra.mxu0 %v636
    %1666 = vmatprep.subr.bf16.mxu0 %v633
    %1667 = vmatpush1.bf16.msra.mxu0 %v632
    %1668 = vmatprep.subr.bf16.mxu0 %v629
    %1669 = vmatpush1.bf16.msra.mxu0 %v628
    %1670 = vmatprep.subr.bf16.mxu0 %v625
    %1671 = vmatpush1.bf16.msra.mxu0 %v624
    %1672 = vmatprep.subr.bf16.mxu0 %v621
    %1673 = vmatpush1.bf16.msra.mxu0 %v620
    %1674 = vmatprep.subr.bf16.mxu0 %v617
    %1675 = vmatpush1.bf16.msra.mxu0 %v616
    %1676 = vmatprep.subr.bf16.mxu0 %v613
    %1677 = vmatpush1.bf16.msra.mxu0 %v612
    %1678 = vmatprep.subr.bf16.mxu0 0
    %1679 = vmatpush2.bf16.msra.mxu0 0
    %1680 = vmatprep.subr.bf16.mxu0 0
    %1681 = vmatpush2.bf16.msra.mxu0 0
    %1682 = vmatprep.subr.bf16.mxu0 0
    %1683 = vmatpush2.bf16.msra.mxu0 0
    %1684 = vmatprep.subr.bf16.mxu0 0
    %1685 = vmatpush2.bf16.msra.mxu0 0
    %1686 = vmatprep.subr.bf16.mxu0 0
    %1687 = vmatpush2.bf16.msra.mxu0 0
    %1688 = vmatprep.subr.bf16.mxu0 0
    %1689 = vmatpush2.bf16.msra.mxu0 0
    %1690 = vmatprep.subr.bf16.mxu0 0
    %1691 = vmatpush2.bf16.msra.mxu0 0
    %1692 = vmatprep.subr.bf16.mxu0 0
    %1693 = vmatpush2.bf16.msra.mxu0 0
    %1694 = vmatprep.mubr.bf16.mxu0 0
    %1695 = vmatmul.mubr.bf16.gmra.mxu0 %v1643
    %v1696 = vpop.f32.mrf.mxu0
    %v1697 = vadd.f32 0.0, %v1696
    %v1698 = vpop.f32.mrf.mxu0
    %v1699 = vadd.f32 0.0, %v1698
    %v1700 = vpop.f32.mrf.mxu0
    %v1701 = vadd.f32 0.0, %v1700
    %v1702 = vpop.f32.mrf.mxu0
    %v1703 = vadd.f32 0.0, %v1702
    %1704 = vdwg.mxu0
    %1705 = vmatprep.subr.bf16.mxu0 %v643
    %1706 = vmatpush1.bf16.msra.mxu0 %v642
    %1707 = vmatprep.subr.bf16.mxu0 %v639
    %1708 = vmatpush1.bf16.msra.mxu0 %v638
    %1709 = vmatprep.subr.bf16.mxu0 %v635
    %1710 = vmatpush1.bf16.msra.mxu0 %v634
    %1711 = vmatprep.subr.bf16.mxu0 %v631
    %1712 = vmatpush1.bf16.msra.mxu0 %v630
    %1713 = vmatprep.subr.bf16.mxu0 %v627
    %1714 = vmatpush1.bf16.msra.mxu0 %v626
    %1715 = vmatprep.subr.bf16.mxu0 %v623
    %1716 = vmatpush1.bf16.msra.mxu0 %v622
    %1717 = vmatprep.subr.bf16.mxu0 %v619
    %1718 = vmatpush1.bf16.msra.mxu0 %v618
    %1719 = vmatprep.subr.bf16.mxu0 %v615
    %1720 = vmatpush1.bf16.msra.mxu0 %v614
    %1721 = vmatprep.subr.bf16.mxu0 0
    %1722 = vmatpush2.bf16.msra.mxu0 0
    %1723 = vmatprep.subr.bf16.mxu0 0
    %1724 = vmatpush2.bf16.msra.mxu0 0
    %1725 = vmatprep.subr.bf16.mxu0 0
    %1726 = vmatpush2.bf16.msra.mxu0 0
    %1727 = vmatprep.subr.bf16.mxu0 0
    %1728 = vmatpush2.bf16.msra.mxu0 0
    %1729 = vmatprep.subr.bf16.mxu0 0
    %1730 = vmatpush2.bf16.msra.mxu0 0
    %1731 = vmatprep.subr.bf16.mxu0 0
    %1732 = vmatpush2.bf16.msra.mxu0 0
    %1733 = vmatprep.subr.bf16.mxu0 0
    %1734 = vmatpush2.bf16.msra.mxu0 0
    %1735 = vmatprep.subr.bf16.mxu0 0
    %1736 = vmatpush2.bf16.msra.mxu0 0
    %1737 = vmatprep.mubr.bf16.mxu0 0
    %1738 = vmatmul.mubr.bf16.gmra.mxu0 %v1643
    %v1739 = vpop.f32.mrf.mxu0
    %v1740 = vadd.f32 0.0, %v1739
    %v1741 = vpop.f32.mrf.mxu0
    %v1742 = vadd.f32 0.0, %v1741
    %v1743 = vpop.f32.mrf.mxu0
    %v1744 = vadd.f32 0.0, %v1743
    %v1745 = vpop.f32.mrf.mxu0
    %v1746 = vadd.f32 0.0, %v1745
    %1747 = vdwg.mxu0
    %v1748 = vadd.f32 %v1654, %v1697
    %v1749 = vadd.f32 %v1655, %v1699
    %v1750 = vadd.f32 %v1656, %v1740
    %v1751 = vadd.f32 %v1657, %v1742
    %v1752 = vadd.f32 %v1658, %v1701
    %v1753 = vadd.f32 %v1659, %v1703
    %v1754 = vadd.f32 %v1660, %v1744
    %v1755 = vadd.f32 %v1661, %v1746
    %vm1756 = vcmp.gt.f32.partialorder %v1748, 0.5
    %vm1757 = vcmp.gt.f32.partialorder %v1752, 0.5
    %vm1758 = vcmp.gt.f32.partialorder %v1749, 0.5
    %vm1759 = vcmp.gt.f32.partialorder %v1753, 0.5
    %vm1760 = vcmp.gt.f32.partialorder %v1750, 0.5
    %vm1761 = vcmp.gt.f32.partialorder %v1754, 0.5
    %vm1762 = vcmp.gt.f32.partialorder %v1751, 0.5
    %vm1763 = vcmp.gt.f32.partialorder %v1755, 0.5
    %v1764 = vmul.f32 %v1633, 0.3
    %v1765 = vmul.f32 %v1634, 0.3
    %v1766 = vsel %vm1758, %v1764, 0.0
    %v1767 = vsel %vm1759, %v1765, 0.0
    %vm1768 = vmand %vm1756, %vm1760
    %vm1769 = vmand %vm1757, %vm1761
    %v1770 = vsel %vm1768, 1, 0
    %v1771 = vsel %vm1769, 1, 0
    %v1772 = vcvt.s32.f32 %v1770
    %v1773 = vcvt.s32.f32 %v1771
    %v1774 = vadd.f32 %v1766, %v1772
    %v1775 = vadd.f32 %v1767, %v1773
    %vm1776 = vcmp.gt.f32.partialorder %v1774, 0.5
    %vm1777 = vcmp.gt.f32.partialorder %v1775, 0.5
    %vm1778 = vmand %vm1762, %vm1776
    %vm1779 = vmand %vm1763, %vm1777
    %v1780 = vsel %vm1778, 1, 0
    %v1781 = vsel %vm1779, 1, 0
    %v1782 = vcvt.s32.f32 %v1780
    %v1783 = vcvt.s32.f32 %v1781
    %v1784 = vpack.c.bf16 %v1783, %v1782
    %v1786 = vunpack.c.l.b16 %v1784
    %v1787 = vunpack.c.h.b16 %v1784
    %v1788 = vpack.c.b16 %v1786, %v1786
    %v1789 = vpack.c.b16 %v1787, %v1787
    %s1792 = scalar_lea.vmem [#allocation8], 56
    %1793 = vst [vmem:[%s1792] sm:$0xf] %v1788
    %1794 = vst [vmem:[%s1792 + $0x4] sm:$0xf] %v1789
    %1795 = vst [vmem:[#allocation2] sm:$0xf] %v1788
    %1796 = vst [vmem:[#allocation2 + $0x4] sm:$0xf] %v1789
    %1797 = vst [vmem:[#allocation3] sm:$0xff] %v1774
    %1798 = vst [vmem:[#allocation3 + $0x8] sm:$0xff] %v1775
    // Predicated region
    $region26: #{tpu_custom_call.1} parent=1 // pred_check
      _
    $region27: #{tpu_custom_call.1} parent=1 // pred_check_branch
      %1800 = sbr.rel (0) target = $region29
    $region28: #{tpu_custom_call.1} parent=1 // pred_region
      %s1802 = ssub.s32 1024, 1024
      %1803 = vsyncadd [#allocation7], %s1802
      %s1804 = sshll.u32 [#allocation8], 4
      %s1805 = int_to_ptr.vmem [resolvable:$true] %s1804
      %1810 = dma.vmem_to_hbm [thread:$0]  %s1805, 1024, %s4, [#allocation7], 64, 64, 4
    $region29: #{tpu_custom_call.1} parent=1 // pred_fallthru
      _
    // Predicated region
    $region30: #{tpu_custom_call.1} parent=1 // pred_check
      _
    $region31: #{tpu_custom_call.1} parent=1 // pred_check_branch
      %1812 = sbr.rel (0) target = $region33
    $region32: #{tpu_custom_call.1} parent=1 // pred_region
      %1813 = dma.done [#allocation7], 1024
    $region33: #{tpu_custom_call.1} parent=1 // pred_fallthru
      _
    %1814 = vsyncpa [#allocation6], 1
    %1815 = vsyncpa [#allocation7], 1

</llo_original>
